<compile_context>
chip_gen: v6e
topology: v6e:2x2x1
jax: 0.10.0
libtpu: 0.0.40
codegen_flags: <defaults>
</compile_context>

<pallas_src>
import functools

import jax
import jax.numpy as jnp
from jax.experimental import pallas as pl
from jax.experimental.pallas import tpu as pltpu

N_EMBD = 120
N_HEAD = 6
HEAD_SIZE = N_EMBD // N_HEAD          # 20
LN_EPS = 1e-5                         # torch.nn.LayerNorm default

SLAB = 128                            # one 128-lane slab holds all 6 heads (120 lanes used)
QKV_W = 3 * SLAB                      # fused QKV output width (q | k | v slabs) = 384
HID = 4 * N_EMBD                      # 480
HID_PAD = 512                         # hidden padded to a lane-dense 512


def _layernorm(x, w):
    # x: (rows, C) f32; centered two-pass variance (better precision than E[x^2]-E[x]^2)
    mu = jnp.mean(x, axis=-1, keepdims=True)
    xc = x - mu
    var = jnp.mean(xc * xc, axis=-1, keepdims=True)
    return xc * jax.lax.rsqrt(var + LN_EPS) * w


def _gelu_exact(x):
    # torch.nn.GELU() default (approximate='none'): 0.5*x*(1+erf(x/sqrt(2)))
    return 0.5 * x * (1.0 + jax.lax.erf(x * jnp.float32(0.7071067811865476)))


def block_kernel(x_ref, ln1_ref, ln2_ref, wqkv_ref, projw_ref, projb_ref,
                 ffw1_ref, ffw2_ref, out_ref, *, batch_block, seq_len):
    Bb, T = batch_block, seq_len
    rows = Bb * T
    bf16 = jnp.bfloat16

    x2d = x_ref[...].astype(jnp.float32)                     # (rows, 120)

    # ---- x = x + proj(MHA(LN1(x))) ---------------------------------------
    h1 = _layernorm(x2d, ln1_ref[...])

    # one narrow fused QKV matmul: lanes [0,128)=Q heads, [128,256)=K, [256,384)=V,
    # heads packed densely (head h at lanes [20h, 20h+20) of its slab).
    qkv = jnp.dot(h1.astype(bf16), wqkv_ref[...],
                  preferred_element_type=jnp.float32)         # (rows, 384) f32
    qkv3 = qkv.reshape(Bb, T, QKV_W)
    q_all = qkv3[:, :, 0:SLAB].astype(bf16)                   # tile-aligned slab slices
    k_all = qkv3[:, :, SLAB:2 * SLAB].astype(bf16)
    v_all = qkv3[:, :, 2 * SLAB:3 * SLAB].astype(bf16)

    # causal mask built once at (T, T), broadcast over the batch dim
    r = jax.lax.broadcasted_iota(jnp.int32, (T, T), 0)
    c = jax.lax.broadcasted_iota(jnp.int32, (T, T), 1)
    causal = (c <= r)[None, :, :]                             # (1, T, T)

    lane = jax.lax.broadcasted_iota(jnp.int32, (1, 1, SLAB), 2)
    scale = jnp.float32(1.0 / (HEAD_SIZE ** 0.5))

    # accumulate each head's output into its own 20 lanes of a single 128-lane slab
    o_heads = jnp.zeros((Bb, T, SLAB), jnp.float32)
    for h in range(N_HEAD):                                   # 6-way unrolled
        mh = (lane >= h * HEAD_SIZE) & (lane < (h + 1) * HEAD_SIZE)   # (1,1,128)
        qm = jnp.where(mh, q_all, jnp.zeros_like(q_all))      # only head h's lanes contribute
        s = jnp.einsum('bqd,bkd->bqk', qm, k_all,
                       preferred_element_type=jnp.float32) * scale    # (Bb,T,T)
        s = jnp.where(causal, s, -jnp.inf)
        s = s - jnp.max(s, axis=-1, keepdims=True)
        p = jnp.exp(s)
        p = p * pl.reciprocal(jnp.sum(p, axis=-1, keepdims=True), approx=True)  # EUP slot
        oh = jnp.einsum('bqk,bkd->bqd', p.astype(bf16), v_all,
                        preferred_element_type=jnp.float32)            # (Bb,T,128)
        o_heads = o_heads + jnp.where(mh, oh, 0.0)            # keep head h's 20 lanes only

    # single merged output projection (replaces 6 per-head projections)
    sa = jnp.dot(o_heads.reshape(rows, SLAB).astype(bf16), projw_ref[...],
                 preferred_element_type=jnp.float32) + projb_ref[...]  # (rows, 120)
    x2 = x2d + sa

    # ---- x = x + W2(GELU(W1(LN2(x)))) --------------------------------------
    h2 = _layernorm(x2, ln2_ref[...])
    hid = jnp.dot(h2.astype(bf16), ffw1_ref[...],
                  preferred_element_type=jnp.float32)          # (rows, 512)
    hid = _gelu_exact(hid)                                     # exact erf GELU (torch default)
    ff = jnp.dot(hid.astype(bf16), ffw2_ref[...],
                 preferred_element_type=jnp.float32)           # (rows, 120)

    out_ref[...] = (x2 + ff).astype(out_ref.dtype)
    # TODO(synk): for very long sequences (T >~ 1-2k) switch the attention to a
    # KV-tiled online-softmax loop instead of materializing (Bb, T, T) scores.


def _pick_batch_block(B, T, target_rows=512):
    # Fold batch rows into M to feed the MXU (~512 rows per grid step), but keep
    # at least 2 grid steps when B >= 2 so both v7x TensorCores are used.
    cap = B // 2 if B >= 2 else B
    want = max(1, min(cap, max(1, target_rows // max(T, 1))))
    for bb in range(want, 0, -1):
        if B % bb == 0 and (bb * T) % 8 == 0:   # sublane-aligned row block
            return bb
    return B                                    # single full block (always legal)


def pack_params(p):
    """Pack + pad weights ONCE (outside the hot path). Matmul weights are bf16."""
    f32, bf16 = jnp.float32, jnp.bfloat16
    C = N_EMBD

    ln1 = p["ln1_w"].reshape(1, C).astype(f32)
    ln2 = p["ln2_w"].reshape(1, C).astype(f32)
    projb = p["proj_b"].reshape(1, C).astype(f32)

    # fused QKV: [ Q heads (dense, 120 of 128 lanes) | K heads | V heads ]
    wqkv = jnp.zeros((C, QKV_W), f32)
    wqkv = wqkv.at[:, 0:C].set(p["wq"].astype(f32))
    wqkv = wqkv.at[:, SLAB:SLAB + C].set(p["wk"].astype(f32))
    wqkv = wqkv.at[:, 2 * SLAB:2 * SLAB + C].set(p["wv"].astype(f32))
    wqkv = wqkv.astype(bf16)

    projw = jnp.zeros((SLAB, C), f32).at[:C, :].set(p["proj_w"].astype(f32)).astype(bf16)
    ffw1 = jnp.zeros((C, HID_PAD), f32).at[:, :HID].set(p["ff_w1"].astype(f32)).astype(bf16)
    ffw2 = jnp.zeros((HID_PAD, C), f32).at[:HID, :].set(p["ff_w2"].astype(f32)).astype(bf16)
    return (ln1, ln2, wqkv, projw, projb, ffw1, ffw2)


@jax.jit
def block_forward(x, packed):
    ln1, ln2, wqkv, projw, projb, ffw1, ffw2 = packed
    B, T, C = x.shape
    assert C == N_EMBD

    # no pad / slice round trips: kernel reads/writes the natural 120-wide rows
    x_flat = x.reshape(B * T, C)

    bb = _pick_batch_block(B, T)
    rows = bb * T
    grid = (B // bb,)

    kernel = functools.partial(block_kernel, batch_block=bb, seq_len=T)

    def full_spec(shape):
        n = len(shape)
        return pl.BlockSpec(shape, lambda i, _n=n: (0,) * _n)

    out_flat = pl.pallas_call(
        kernel,
        out_shape=jax.ShapeDtypeStruct((B * T, C), x.dtype),
        grid_spec=pltpu.PrefetchScalarGridSpec(
            num_scalar_prefetch=0,
            grid=grid,
            in_specs=[
                pl.BlockSpec((rows, C), lambda i: (i, 0)),   # x rows
                full_spec((1, C)),                           # ln1_w
                full_spec((1, C)),                           # ln2_w
                full_spec((C, QKV_W)),                       # fused qkv weights (bf16)
                full_spec((SLAB, C)),                        # merged proj weight (bf16)
                full_spec((1, C)),                           # proj bias
                full_spec((C, HID_PAD)),                     # ff_w1 (bf16)
                full_spec((HID_PAD, C)),                     # ff_w2 (bf16)
            ],
            out_specs=pl.BlockSpec((rows, C), lambda i: (i, 0)),
        ),
        compiler_params=pltpu.CompilerParams(
            dimension_semantics=("parallel",),
            vmem_limit_bytes=32 * 1024 * 1024),
    )(x_flat, ln1, ln2, wqkv, projw, projb, ffw1, ffw2)

    return out_flat.reshape(B, T, C)


def reference_forward(x, p):
    # pure-JAX f32 reference with identical semantics
    def ln(v, w):
        mu = jnp.mean(v, axis=-1, keepdims=True)
        vc = v - mu
        var = jnp.mean(vc * vc, axis=-1, keepdims=True)
        return vc * jax.lax.rsqrt(var + LN_EPS) * w

    B, T, C = x.shape
    h = ln(x, p["ln1_w"])
    q = h @ p["wq"]
    k = h @ p["wk"]
    v = h @ p["wv"]
    qh = q.reshape(B, T, N_HEAD, HEAD_SIZE).transpose(0, 2, 1, 3)
    kh = k.reshape(B, T, N_HEAD, HEAD_SIZE).transpose(0, 2, 1, 3)
    vh = v.reshape(B, T, N_HEAD, HEAD_SIZE).transpose(0, 2, 1, 3)
    s = jnp.einsum("bhtd,bhsd->bhts", qh, kh) / jnp.sqrt(jnp.float32(HEAD_SIZE))
    mask = jnp.tril(jnp.ones((T, T), dtype=bool))
    s = jnp.where(mask, s, -jnp.inf)
    att = jax.nn.softmax(s, axis=-1)
    o = jnp.einsum("bhts,bhsd->bhtd", att, vh).transpose(0, 2, 1, 3).reshape(B, T, C)
    sa = o @ p["proj_w"] + p["proj_b"]
    x2 = x + sa
    h2 = ln(x2, p["ln2_w"])
    hidden = h2 @ p["ff_w1"]
    gelu = 0.5 * hidden * (1.0 + jax.lax.erf(hidden * jnp.float32(0.7071067811865476)))
    return x2 + gelu @ p["ff_w2"]


def init_params(key, C):
    ks = jax.random.split(key, 8)
    scale = 1.0 / jnp.sqrt(jnp.float32(C))
    u = lambda k, shape, s: jax.random.uniform(k, shape, jnp.float32, -s, s)
    return {
        "ln1_w": jnp.ones((C,), jnp.float32),
        "ln2_w": jnp.ones((C,), jnp.float32),
        "wq": u(ks[0], (C, C), scale),
        "wk": u(ks[1], (C, C), scale),
        "wv": u(ks[2], (C, C), scale),
        "proj_w": u(ks[3], (C, C), scale),
        "proj_b": u(ks[4], (C,), scale),
        "ff_w1": u(ks[5], (C, 4 * C), scale),
        "ff_w2": u(ks[6], (4 * C, C), 1.0 / jnp.sqrt(jnp.float32(4 * C))),
    }


if __name__ == "__main__":
    B, T = 2, 8
    key = jax.random.PRNGKey(0)
    kx, kp = jax.random.split(key)
    x = jax.random.normal(kx, (B, T, N_EMBD), jnp.float32)
    params = init_params(kp, N_EMBD)

    packed = pack_params(params)      # packed ONCE, outside the jitted forward
    out = jax.block_until_ready(block_forward(x, packed))
    ref = reference_forward(x, params)

    assert out.shape == (B, T, N_EMBD)
    err = float(jnp.max(jnp.abs(out - ref)))
    # tolerance accounts for bf16 matmul operands + approx softmax reciprocal
    assert err < 5e-2, err
    # TODO(synk): dropout layers are p=0 in the spec (identity at inference), so omitted.
    print("KERNEL_OK")
</pallas_src>

<mosaic_0001>
module attributes {stable_mosaic.version = 11 : i64} {
  func.func @block_kernel(%arg0: i32, %arg1: memref<8x120xf32, #tpu.memory_space<vmem>>, %arg2: memref<1x120xf32, #tpu.memory_space<vmem>>, %arg3: memref<1x120xf32, #tpu.memory_space<vmem>>, %arg4: memref<120x384xbf16, #tpu.memory_space<vmem>>, %arg5: memref<128x120xbf16, #tpu.memory_space<vmem>>, %arg6: memref<1x120xf32, #tpu.memory_space<vmem>>, %arg7: memref<120x512xbf16, #tpu.memory_space<vmem>>, %arg8: memref<512x120xbf16, #tpu.memory_space<vmem>>, %arg9: memref<8x120xf32, #tpu.memory_space<vmem>>) attributes {dimension_semantics = [#tpu.dimension_semantics<parallel>], iteration_bounds = array<i64: 2>, scalar_prefetch = 0 : i64, scratch_operands = 0 : i64, tpu.core_type = #tpu.core_type<tc>, window_params = [{transform_indices = @transform_0, window_bounds = array<i64: 8, 120>}, {pipeline_mode = #tpu.pipeline_mode<synchronous>, transform_indices = @transform_1, window_bounds = array<i64: 1, 120>}, {pipeline_mode = #tpu.pipeline_mode<synchronous>, transform_indices = @transform_2, window_bounds = array<i64: 1, 120>}, {pipeline_mode = #tpu.pipeline_mode<synchronous>, transform_indices = @transform_3, window_bounds = array<i64: 120, 384>}, {pipeline_mode = #tpu.pipeline_mode<synchronous>, transform_indices = @transform_4, window_bounds = array<i64: 128, 120>}, {pipeline_mode = #tpu.pipeline_mode<synchronous>, transform_indices = @transform_5, window_bounds = array<i64: 1, 120>}, {pipeline_mode = #tpu.pipeline_mode<synchronous>, transform_indices = @transform_6, window_bounds = array<i64: 120, 512>}, {pipeline_mode = #tpu.pipeline_mode<synchronous>, transform_indices = @transform_7, window_bounds = array<i64: 512, 120>}, {transform_indices = @transform_8, window_bounds = array<i64: 8, 120>}]} {
    %c0 = arith.constant 0 : index
    %c0_0 = arith.constant 0 : index
    %0 = vector.load %arg1[%c0, %c0_0] : memref<8x120xf32, #tpu.memory_space<vmem>>, vector<8x120xf32>
    %c0_1 = arith.constant 0 : index
    %c0_2 = arith.constant 0 : index
    %1 = vector.load %arg2[%c0_1, %c0_2] : memref<1x120xf32, #tpu.memory_space<vmem>>, vector<1x120xf32>
    %cst = arith.constant dense<0.000000e+00> : vector<8xf32>
    %2 = vector.multi_reduction <add>, %0, %cst [1] : vector<8x120xf32> to vector<8xf32>
    %3 = vector.shape_cast %2 : vector<8xf32> to vector<8x1xf32>
    %cst_3 = arith.constant 1.200000e+02 : f32
    %4 = vector.broadcast %cst_3 : f32 to vector<8x1xf32>
    %5 = arith.divf %3, %4 : vector<8x1xf32>
    %6 = vector.broadcast %5 : vector<8x1xf32> to vector<8x120xf32>
    %7 = arith.subf %0, %6 : vector<8x120xf32>
    %8 = arith.mulf %7, %7 : vector<8x120xf32>
    %cst_4 = arith.constant dense<0.000000e+00> : vector<8xf32>
    %9 = vector.multi_reduction <add>, %8, %cst_4 [1] : vector<8x120xf32> to vector<8xf32>
    %10 = vector.shape_cast %9 : vector<8xf32> to vector<8x1xf32>
    %cst_5 = arith.constant 1.200000e+02 : f32
    %11 = vector.broadcast %cst_5 : f32 to vector<8x1xf32>
    %12 = arith.divf %10, %11 : vector<8x1xf32>
    %cst_6 = arith.constant 9.99999974E-6 : f32
    %13 = vector.broadcast %cst_6 : f32 to vector<8x1xf32>
    %14 = arith.addf %12, %13 : vector<8x1xf32>
    %15 = math.rsqrt %14 : vector<8x1xf32>
    %16 = vector.broadcast %15 : vector<8x1xf32> to vector<8x120xf32>
    %17 = arith.mulf %7, %16 : vector<8x120xf32>
    %18 = vector.broadcast %1 : vector<1x120xf32> to vector<8x120xf32>
    %19 = arith.mulf %17, %18 : vector<8x120xf32>
    %20 = arith.truncf %19 : vector<8x120xf32> to vector<8x120xbf16>
    %c0_7 = arith.constant 0 : index
    %c0_8 = arith.constant 0 : index
    %21 = vector.load %arg4[%c0_7, %c0_8] : memref<120x384xbf16, #tpu.memory_space<vmem>>, vector<120x384xbf16>
    %cst_9 = arith.constant dense<0.000000e+00> : vector<8x384xf32>
    %22 = tpu.matmul %20, %21, %cst_9 {dimension_numbers = #tpu.dot_dimension_numbers<[1], [0], [0], [1], [0, 0, 1, 1], [], []>} : vector<8x120xbf16>, vector<120x384xbf16>, vector<8x384xf32> -> vector<8x384xf32>
    %23 = vector.shape_cast %22 : vector<8x384xf32> to vector<1x8x384xf32>
    %24 = vector.extract_strided_slice %23 {offsets = [0, 0, 0], sizes = [1, 8, 128], strides = [1, 1, 1]} : vector<1x8x384xf32> to vector<1x8x128xf32>
    %25 = arith.truncf %24 : vector<1x8x128xf32> to vector<1x8x128xbf16>
    %26 = vector.extract_strided_slice %23 {offsets = [0, 0, 128], sizes = [1, 8, 128], strides = [1, 1, 1]} : vector<1x8x384xf32> to vector<1x8x128xf32>
    %27 = arith.truncf %26 : vector<1x8x128xf32> to vector<1x8x128xbf16>
    %28 = vector.extract_strided_slice %23 {offsets = [0, 0, 256], sizes = [1, 8, 128], strides = [1, 1, 1]} : vector<1x8x384xf32> to vector<1x8x128xf32>
    %29 = arith.truncf %28 : vector<1x8x128xf32> to vector<1x8x128xbf16>
    %30 = tpu.iota {dimensions = array<i32: 0>} : vector<8x8xi32>
    %31 = tpu.iota {dimensions = array<i32: 1>} : vector<8x8xi32>
    %32 = arith.cmpi sle, %31, %30 : vector<8x8xi32>
    %33 = vector.shape_cast %32 : vector<8x8xi1> to vector<1x8x8xi1>
    %34 = tpu.iota {dimensions = array<i32: 2>} : vector<1x1x128xi32>
    %cst_10 = arith.constant 0.000000e+00 : f32
    %35 = vector.broadcast %cst_10 : f32 to vector<1x8x128xf32>
    %c0_i32 = arith.constant 0 : i32
    %36 = vector.broadcast %c0_i32 : i32 to vector<1x1x128xi32>
    %37 = arith.cmpi sge, %34, %36 : vector<1x1x128xi32>
    %c20_i32 = arith.constant 20 : i32
    %38 = vector.broadcast %c20_i32 : i32 to vector<1x1x128xi32>
    %39 = arith.cmpi slt, %34, %38 : vector<1x1x128xi32>
    %40 = arith.andi %37, %39 : vector<1x1x128xi1>
    %cst_11 = arith.constant 0.000000e+00 : bf16
    %41 = vector.broadcast %cst_11 : bf16 to vector<1x8x128xbf16>
    %42 = vector.shape_cast %40 : vector<1x1x128xi1> to vector<1x1x128xi1>
    %43 = vector.broadcast %42 : vector<1x1x128xi1> to vector<1x8x128xi1>
    %44 = arith.select %43, %25, %41 : vector<1x8x128xi1>, vector<1x8x128xbf16>
    "tpu.trace_start"() <{level = 10 : i32, message = "bqd,bkd->bqk"}> : () -> ()
    %cst_12 = arith.constant dense<0.000000e+00> : vector<1x8x8xf32>
    %45 = tpu.matmul %44, %27, %cst_12 {dimension_numbers = #tpu.dot_dimension_numbers<[2], [2], [1], [1], [0, 0, 0, 1, 1, 1], [0], [0]>} : vector<1x8x128xbf16>, vector<1x8x128xbf16>, vector<1x8x8xf32> -> vector<1x8x8xf32>
    "tpu.trace_stop"() : () -> ()
    %cst_13 = arith.constant 0.223606795 : f32
    %46 = vector.broadcast %cst_13 : f32 to vector<1x8x8xf32>
    %47 = arith.mulf %45, %46 : vector<1x8x8xf32>
    %cst_14 = arith.constant 0xFF800000 : f32
    %48 = vector.broadcast %cst_14 : f32 to vector<1x8x8xf32>
    %49 = arith.select %33, %47, %48 : vector<1x8x8xi1>, vector<1x8x8xf32>
    %cst_15 = arith.constant dense<0xFF800000> : vector<1x8xf32>
    %50 = vector.multi_reduction <maximumf>, %49, %cst_15 [2] : vector<1x8x8xf32> to vector<1x8xf32>
    %51 = vector.shape_cast %50 : vector<1x8xf32> to vector<1x8x1xf32>
    %52 = vector.broadcast %51 : vector<1x8x1xf32> to vector<1x8x8xf32>
    %53 = arith.subf %49, %52 : vector<1x8x8xf32>
    %54 = math.exp %53 : vector<1x8x8xf32>
    %cst_16 = arith.constant dense<0.000000e+00> : vector<1x8xf32>
    %55 = vector.multi_reduction <add>, %54, %cst_16 [2] : vector<1x8x8xf32> to vector<1x8xf32>
    %56 = vector.shape_cast %55 : vector<1x8xf32> to vector<1x8x1xf32>
    %57 = tpu.reciprocal %56 {approx = true} : vector<1x8x1xf32> -> vector<1x8x1xf32>
    %58 = vector.broadcast %57 : vector<1x8x1xf32> to vector<1x8x8xf32>
    %59 = arith.mulf %54, %58 : vector<1x8x8xf32>
    %60 = arith.truncf %59 : vector<1x8x8xf32> to vector<1x8x8xbf16>
    "tpu.trace_start"() <{level = 10 : i32, message = "bqk,bkd->bqd"}> : () -> ()
    %cst_17 = arith.constant dense<0.000000e+00> : vector<1x8x128xf32>
    %61 = tpu.matmul %60, %29, %cst_17 {dimension_numbers = #tpu.dot_dimension_numbers<[2], [1], [1], [2], [0, 0, 0, 1, 1, 2], [0], [0]>} : vector<1x8x8xbf16>, vector<1x8x128xbf16>, vector<1x8x128xf32> -> vector<1x8x128xf32>
    %cst_18 = arith.constant 0.000000e+00 : f32
    "tpu.trace_stop"() : () -> ()
    %62 = vector.shape_cast %40 : vector<1x1x128xi1> to vector<1x1x128xi1>
    %63 = vector.broadcast %62 : vector<1x1x128xi1> to vector<1x8x128xi1>
    %64 = vector.broadcast %cst_18 : f32 to vector<1x8x128xf32>
    %65 = arith.select %63, %61, %64 : vector<1x8x128xi1>, vector<1x8x128xf32>
    %66 = arith.addf %35, %65 : vector<1x8x128xf32>
    %c20_i32_19 = arith.constant 20 : i32
    %67 = vector.broadcast %c20_i32_19 : i32 to vector<1x1x128xi32>
    %68 = arith.cmpi sge, %34, %67 : vector<1x1x128xi32>
    %c40_i32 = arith.constant 40 : i32
    %69 = vector.broadcast %c40_i32 : i32 to vector<1x1x128xi32>
    %70 = arith.cmpi slt, %34, %69 : vector<1x1x128xi32>
    %71 = arith.andi %68, %70 : vector<1x1x128xi1>
    %cst_20 = arith.constant 0.000000e+00 : bf16
    %72 = vector.broadcast %cst_20 : bf16 to vector<1x8x128xbf16>
    %73 = vector.shape_cast %71 : vector<1x1x128xi1> to vector<1x1x128xi1>
    %74 = vector.broadcast %73 : vector<1x1x128xi1> to vector<1x8x128xi1>
    %75 = arith.select %74, %25, %72 : vector<1x8x128xi1>, vector<1x8x128xbf16>
    "tpu.trace_start"() <{level = 10 : i32, message = "bqd,bkd->bqk"}> : () -> ()
    %cst_21 = arith.constant dense<0.000000e+00> : vector<1x8x8xf32>
    %76 = tpu.matmul %75, %27, %cst_21 {dimension_numbers = #tpu.dot_dimension_numbers<[2], [2], [1], [1], [0, 0, 0, 1, 1, 1], [0], [0]>} : vector<1x8x128xbf16>, vector<1x8x128xbf16>, vector<1x8x8xf32> -> vector<1x8x8xf32>
    "tpu.trace_stop"() : () -> ()
    %cst_22 = arith.constant 0.223606795 : f32
    %77 = vector.broadcast %cst_22 : f32 to vector<1x8x8xf32>
    %78 = arith.mulf %76, %77 : vector<1x8x8xf32>
    %cst_23 = arith.constant 0xFF800000 : f32
    %79 = vector.broadcast %cst_23 : f32 to vector<1x8x8xf32>
    %80 = arith.select %33, %78, %79 : vector<1x8x8xi1>, vector<1x8x8xf32>
    %cst_24 = arith.constant dense<0xFF800000> : vector<1x8xf32>
    %81 = vector.multi_reduction <maximumf>, %80, %cst_24 [2] : vector<1x8x8xf32> to vector<1x8xf32>
    %82 = vector.shape_cast %81 : vector<1x8xf32> to vector<1x8x1xf32>
    %83 = vector.broadcast %82 : vector<1x8x1xf32> to vector<1x8x8xf32>
    %84 = arith.subf %80, %83 : vector<1x8x8xf32>
    %85 = math.exp %84 : vector<1x8x8xf32>
    %cst_25 = arith.constant dense<0.000000e+00> : vector<1x8xf32>
    %86 = vector.multi_reduction <add>, %85, %cst_25 [2] : vector<1x8x8xf32> to vector<1x8xf32>
    %87 = vector.shape_cast %86 : vector<1x8xf32> to vector<1x8x1xf32>
    %88 = tpu.reciprocal %87 {approx = true} : vector<1x8x1xf32> -> vector<1x8x1xf32>
    %89 = vector.broadcast %88 : vector<1x8x1xf32> to vector<1x8x8xf32>
    %90 = arith.mulf %85, %89 : vector<1x8x8xf32>
    %91 = arith.truncf %90 : vector<1x8x8xf32> to vector<1x8x8xbf16>
    "tpu.trace_start"() <{level = 10 : i32, message = "bqk,bkd->bqd"}> : () -> ()
    %cst_26 = arith.constant dense<0.000000e+00> : vector<1x8x128xf32>
    %92 = tpu.matmul %91, %29, %cst_26 {dimension_numbers = #tpu.dot_dimension_numbers<[2], [1], [1], [2], [0, 0, 0, 1, 1, 2], [0], [0]>} : vector<1x8x8xbf16>, vector<1x8x128xbf16>, vector<1x8x128xf32> -> vector<1x8x128xf32>
    %cst_27 = arith.constant 0.000000e+00 : f32
    "tpu.trace_stop"() : () -> ()
    %93 = vector.shape_cast %71 : vector<1x1x128xi1> to vector<1x1x128xi1>
    %94 = vector.broadcast %93 : vector<1x1x128xi1> to vector<1x8x128xi1>
    %95 = vector.broadcast %cst_27 : f32 to vector<1x8x128xf32>
    %96 = arith.select %94, %92, %95 : vector<1x8x128xi1>, vector<1x8x128xf32>
    %97 = arith.addf %66, %96 : vector<1x8x128xf32>
    %c40_i32_28 = arith.constant 40 : i32
    %98 = vector.broadcast %c40_i32_28 : i32 to vector<1x1x128xi32>
    %99 = arith.cmpi sge, %34, %98 : vector<1x1x128xi32>
    %c60_i32 = arith.constant 60 : i32
    %100 = vector.broadcast %c60_i32 : i32 to vector<1x1x128xi32>
    %101 = arith.cmpi slt, %34, %100 : vector<1x1x128xi32>
    %102 = arith.andi %99, %101 : vector<1x1x128xi1>
    %cst_29 = arith.constant 0.000000e+00 : bf16
    %103 = vector.broadcast %cst_29 : bf16 to vector<1x8x128xbf16>
    %104 = vector.shape_cast %102 : vector<1x1x128xi1> to vector<1x1x128xi1>
    %105 = vector.broadcast %104 : vector<1x1x128xi1> to vector<1x8x128xi1>
    %106 = arith.select %105, %25, %103 : vector<1x8x128xi1>, vector<1x8x128xbf16>
    "tpu.trace_start"() <{level = 10 : i32, message = "bqd,bkd->bqk"}> : () -> ()
    %cst_30 = arith.constant dense<0.000000e+00> : vector<1x8x8xf32>
    %107 = tpu.matmul %106, %27, %cst_30 {dimension_numbers = #tpu.dot_dimension_numbers<[2], [2], [1], [1], [0, 0, 0, 1, 1, 1], [0], [0]>} : vector<1x8x128xbf16>, vector<1x8x128xbf16>, vector<1x8x8xf32> -> vector<1x8x8xf32>
    "tpu.trace_stop"() : () -> ()
    %cst_31 = arith.constant 0.223606795 : f32
    %108 = vector.broadcast %cst_31 : f32 to vector<1x8x8xf32>
    %109 = arith.mulf %107, %108 : vector<1x8x8xf32>
    %cst_32 = arith.constant 0xFF800000 : f32
    %110 = vector.broadcast %cst_32 : f32 to vector<1x8x8xf32>
    %111 = arith.select %33, %109, %110 : vector<1x8x8xi1>, vector<1x8x8xf32>
    %cst_33 = arith.constant dense<0xFF800000> : vector<1x8xf32>
    %112 = vector.multi_reduction <maximumf>, %111, %cst_33 [2] : vector<1x8x8xf32> to vector<1x8xf32>
    %113 = vector.shape_cast %112 : vector<1x8xf32> to vector<1x8x1xf32>
    %114 = vector.broadcast %113 : vector<1x8x1xf32> to vector<1x8x8xf32>
    %115 = arith.subf %111, %114 : vector<1x8x8xf32>
    %116 = math.exp %115 : vector<1x8x8xf32>
    %cst_34 = arith.constant dense<0.000000e+00> : vector<1x8xf32>
    %117 = vector.multi_reduction <add>, %116, %cst_34 [2] : vector<1x8x8xf32> to vector<1x8xf32>
    %118 = vector.shape_cast %117 : vector<1x8xf32> to vector<1x8x1xf32>
    %119 = tpu.reciprocal %118 {approx = true} : vector<1x8x1xf32> -> vector<1x8x1xf32>
    %120 = vector.broadcast %119 : vector<1x8x1xf32> to vector<1x8x8xf32>
    %121 = arith.mulf %116, %120 : vector<1x8x8xf32>
    %122 = arith.truncf %121 : vector<1x8x8xf32> to vector<1x8x8xbf16>
    "tpu.trace_start"() <{level = 10 : i32, message = "bqk,bkd->bqd"}> : () -> ()
    %cst_35 = arith.constant dense<0.000000e+00> : vector<1x8x128xf32>
    %123 = tpu.matmul %122, %29, %cst_35 {dimension_numbers = #tpu.dot_dimension_numbers<[2], [1], [1], [2], [0, 0, 0, 1, 1, 2], [0], [0]>} : vector<1x8x8xbf16>, vector<1x8x128xbf16>, vector<1x8x128xf32> -> vector<1x8x128xf32>
    %cst_36 = arith.constant 0.000000e+00 : f32
    "tpu.trace_stop"() : () -> ()
    %124 = vector.shape_cast %102 : vector<1x1x128xi1> to vector<1x1x128xi1>
    %125 = vector.broadcast %124 : vector<1x1x128xi1> to vector<1x8x128xi1>
    %126 = vector.broadcast %cst_36 : f32 to vector<1x8x128xf32>
    %127 = arith.select %125, %123, %126 : vector<1x8x128xi1>, vector<1x8x128xf32>
    %128 = arith.addf %97, %127 : vector<1x8x128xf32>
    %c60_i32_37 = arith.constant 60 : i32
    %129 = vector.broadcast %c60_i32_37 : i32 to vector<1x1x128xi32>
    %130 = arith.cmpi sge, %34, %129 : vector<1x1x128xi32>
    %c80_i32 = arith.constant 80 : i32
    %131 = vector.broadcast %c80_i32 : i32 to vector<1x1x128xi32>
    %132 = arith.cmpi slt, %34, %131 : vector<1x1x128xi32>
    %133 = arith.andi %130, %132 : vector<1x1x128xi1>
    %cst_38 = arith.constant 0.000000e+00 : bf16
    %134 = vector.broadcast %cst_38 : bf16 to vector<1x8x128xbf16>
    %135 = vector.shape_cast %133 : vector<1x1x128xi1> to vector<1x1x128xi1>
    %136 = vector.broadcast %135 : vector<1x1x128xi1> to vector<1x8x128xi1>
    %137 = arith.select %136, %25, %134 : vector<1x8x128xi1>, vector<1x8x128xbf16>
    "tpu.trace_start"() <{level = 10 : i32, message = "bqd,bkd->bqk"}> : () -> ()
    %cst_39 = arith.constant dense<0.000000e+00> : vector<1x8x8xf32>
    %138 = tpu.matmul %137, %27, %cst_39 {dimension_numbers = #tpu.dot_dimension_numbers<[2], [2], [1], [1], [0, 0, 0, 1, 1, 1], [0], [0]>} : vector<1x8x128xbf16>, vector<1x8x128xbf16>, vector<1x8x8xf32> -> vector<1x8x8xf32>
    "tpu.trace_stop"() : () -> ()
    %cst_40 = arith.constant 0.223606795 : f32
    %139 = vector.broadcast %cst_40 : f32 to vector<1x8x8xf32>
    %140 = arith.mulf %138, %139 : vector<1x8x8xf32>
    %cst_41 = arith.constant 0xFF800000 : f32
    %141 = vector.broadcast %cst_41 : f32 to vector<1x8x8xf32>
    %142 = arith.select %33, %140, %141 : vector<1x8x8xi1>, vector<1x8x8xf32>
    %cst_42 = arith.constant dense<0xFF800000> : vector<1x8xf32>
    %143 = vector.multi_reduction <maximumf>, %142, %cst_42 [2] : vector<1x8x8xf32> to vector<1x8xf32>
    %144 = vector.shape_cast %143 : vector<1x8xf32> to vector<1x8x1xf32>
    %145 = vector.broadcast %144 : vector<1x8x1xf32> to vector<1x8x8xf32>
    %146 = arith.subf %142, %145 : vector<1x8x8xf32>
    %147 = math.exp %146 : vector<1x8x8xf32>
    %cst_43 = arith.constant dense<0.000000e+00> : vector<1x8xf32>
    %148 = vector.multi_reduction <add>, %147, %cst_43 [2] : vector<1x8x8xf32> to vector<1x8xf32>
    %149 = vector.shape_cast %148 : vector<1x8xf32> to vector<1x8x1xf32>
    %150 = tpu.reciprocal %149 {approx = true} : vector<1x8x1xf32> -> vector<1x8x1xf32>
    %151 = vector.broadcast %150 : vector<1x8x1xf32> to vector<1x8x8xf32>
    %152 = arith.mulf %147, %151 : vector<1x8x8xf32>
    %153 = arith.truncf %152 : vector<1x8x8xf32> to vector<1x8x8xbf16>
    "tpu.trace_start"() <{level = 10 : i32, message = "bqk,bkd->bqd"}> : () -> ()
    %cst_44 = arith.constant dense<0.000000e+00> : vector<1x8x128xf32>
    %154 = tpu.matmul %153, %29, %cst_44 {dimension_numbers = #tpu.dot_dimension_numbers<[2], [1], [1], [2], [0, 0, 0, 1, 1, 2], [0], [0]>} : vector<1x8x8xbf16>, vector<1x8x128xbf16>, vector<1x8x128xf32> -> vector<1x8x128xf32>
    %cst_45 = arith.constant 0.000000e+00 : f32
    "tpu.trace_stop"() : () -> ()
    %155 = vector.shape_cast %133 : vector<1x1x128xi1> to vector<1x1x128xi1>
    %156 = vector.broadcast %155 : vector<1x1x128xi1> to vector<1x8x128xi1>
    %157 = vector.broadcast %cst_45 : f32 to vector<1x8x128xf32>
    %158 = arith.select %156, %154, %157 : vector<1x8x128xi1>, vector<1x8x128xf32>
    %159 = arith.addf %128, %158 : vector<1x8x128xf32>
    %c80_i32_46 = arith.constant 80 : i32
    %160 = vector.broadcast %c80_i32_46 : i32 to vector<1x1x128xi32>
    %161 = arith.cmpi sge, %34, %160 : vector<1x1x128xi32>
    %c100_i32 = arith.constant 100 : i32
    %162 = vector.broadcast %c100_i32 : i32 to vector<1x1x128xi32>
    %163 = arith.cmpi slt, %34, %162 : vector<1x1x128xi32>
    %164 = arith.andi %161, %163 : vector<1x1x128xi1>
    %cst_47 = arith.constant 0.000000e+00 : bf16
    %165 = vector.broadcast %cst_47 : bf16 to vector<1x8x128xbf16>
    %166 = vector.shape_cast %164 : vector<1x1x128xi1> to vector<1x1x128xi1>
    %167 = vector.broadcast %166 : vector<1x1x128xi1> to vector<1x8x128xi1>
    %168 = arith.select %167, %25, %165 : vector<1x8x128xi1>, vector<1x8x128xbf16>
    "tpu.trace_start"() <{level = 10 : i32, message = "bqd,bkd->bqk"}> : () -> ()
    %cst_48 = arith.constant dense<0.000000e+00> : vector<1x8x8xf32>
    %169 = tpu.matmul %168, %27, %cst_48 {dimension_numbers = #tpu.dot_dimension_numbers<[2], [2], [1], [1], [0, 0, 0, 1, 1, 1], [0], [0]>} : vector<1x8x128xbf16>, vector<1x8x128xbf16>, vector<1x8x8xf32> -> vector<1x8x8xf32>
    "tpu.trace_stop"() : () -> ()
    %cst_49 = arith.constant 0.223606795 : f32
    %170 = vector.broadcast %cst_49 : f32 to vector<1x8x8xf32>
    %171 = arith.mulf %169, %170 : vector<1x8x8xf32>
    %cst_50 = arith.constant 0xFF800000 : f32
    %172 = vector.broadcast %cst_50 : f32 to vector<1x8x8xf32>
    %173 = arith.select %33, %171, %172 : vector<1x8x8xi1>, vector<1x8x8xf32>
    %cst_51 = arith.constant dense<0xFF800000> : vector<1x8xf32>
    %174 = vector.multi_reduction <maximumf>, %173, %cst_51 [2] : vector<1x8x8xf32> to vector<1x8xf32>
    %175 = vector.shape_cast %174 : vector<1x8xf32> to vector<1x8x1xf32>
    %176 = vector.broadcast %175 : vector<1x8x1xf32> to vector<1x8x8xf32>
    %177 = arith.subf %173, %176 : vector<1x8x8xf32>
    %178 = math.exp %177 : vector<1x8x8xf32>
    %cst_52 = arith.constant dense<0.000000e+00> : vector<1x8xf32>
    %179 = vector.multi_reduction <add>, %178, %cst_52 [2] : vector<1x8x8xf32> to vector<1x8xf32>
    %180 = vector.shape_cast %179 : vector<1x8xf32> to vector<1x8x1xf32>
    %181 = tpu.reciprocal %180 {approx = true} : vector<1x8x1xf32> -> vector<1x8x1xf32>
    %182 = vector.broadcast %181 : vector<1x8x1xf32> to vector<1x8x8xf32>
    %183 = arith.mulf %178, %182 : vector<1x8x8xf32>
    %184 = arith.truncf %183 : vector<1x8x8xf32> to vector<1x8x8xbf16>
    "tpu.trace_start"() <{level = 10 : i32, message = "bqk,bkd->bqd"}> : () -> ()
    %cst_53 = arith.constant dense<0.000000e+00> : vector<1x8x128xf32>
    %185 = tpu.matmul %184, %29, %cst_53 {dimension_numbers = #tpu.dot_dimension_numbers<[2], [1], [1], [2], [0, 0, 0, 1, 1, 2], [0], [0]>} : vector<1x8x8xbf16>, vector<1x8x128xbf16>, vector<1x8x128xf32> -> vector<1x8x128xf32>
    %cst_54 = arith.constant 0.000000e+00 : f32
    "tpu.trace_stop"() : () -> ()
    %186 = vector.shape_cast %164 : vector<1x1x128xi1> to vector<1x1x128xi1>
    %187 = vector.broadcast %186 : vector<1x1x128xi1> to vector<1x8x128xi1>
    %188 = vector.broadcast %cst_54 : f32 to vector<1x8x128xf32>
    %189 = arith.select %187, %185, %188 : vector<1x8x128xi1>, vector<1x8x128xf32>
    %190 = arith.addf %159, %189 : vector<1x8x128xf32>
    %c100_i32_55 = arith.constant 100 : i32
    %191 = vector.broadcast %c100_i32_55 : i32 to vector<1x1x128xi32>
    %192 = arith.cmpi sge, %34, %191 : vector<1x1x128xi32>
    %c120_i32 = arith.constant 120 : i32
    %193 = vector.broadcast %c120_i32 : i32 to vector<1x1x128xi32>
    %194 = arith.cmpi slt, %34, %193 : vector<1x1x128xi32>
    %195 = arith.andi %192, %194 : vector<1x1x128xi1>
    %cst_56 = arith.constant 0.000000e+00 : bf16
    %196 = vector.broadcast %cst_56 : bf16 to vector<1x8x128xbf16>
    %197 = vector.shape_cast %195 : vector<1x1x128xi1> to vector<1x1x128xi1>
    %198 = vector.broadcast %197 : vector<1x1x128xi1> to vector<1x8x128xi1>
    %199 = arith.select %198, %25, %196 : vector<1x8x128xi1>, vector<1x8x128xbf16>
    "tpu.trace_start"() <{level = 10 : i32, message = "bqd,bkd->bqk"}> : () -> ()
    %cst_57 = arith.constant dense<0.000000e+00> : vector<1x8x8xf32>
    %200 = tpu.matmul %199, %27, %cst_57 {dimension_numbers = #tpu.dot_dimension_numbers<[2], [2], [1], [1], [0, 0, 0, 1, 1, 1], [0], [0]>} : vector<1x8x128xbf16>, vector<1x8x128xbf16>, vector<1x8x8xf32> -> vector<1x8x8xf32>
    "tpu.trace_stop"() : () -> ()
    %cst_58 = arith.constant 0.223606795 : f32
    %201 = vector.broadcast %cst_58 : f32 to vector<1x8x8xf32>
    %202 = arith.mulf %200, %201 : vector<1x8x8xf32>
    %cst_59 = arith.constant 0xFF800000 : f32
    %203 = vector.broadcast %cst_59 : f32 to vector<1x8x8xf32>
    %204 = arith.select %33, %202, %203 : vector<1x8x8xi1>, vector<1x8x8xf32>
    %cst_60 = arith.constant dense<0xFF800000> : vector<1x8xf32>
    %205 = vector.multi_reduction <maximumf>, %204, %cst_60 [2] : vector<1x8x8xf32> to vector<1x8xf32>
    %206 = vector.shape_cast %205 : vector<1x8xf32> to vector<1x8x1xf32>
    %207 = vector.broadcast %206 : vector<1x8x1xf32> to vector<1x8x8xf32>
    %208 = arith.subf %204, %207 : vector<1x8x8xf32>
    %209 = math.exp %208 : vector<1x8x8xf32>
    %cst_61 = arith.constant dense<0.000000e+00> : vector<1x8xf32>
    %210 = vector.multi_reduction <add>, %209, %cst_61 [2] : vector<1x8x8xf32> to vector<1x8xf32>
    %211 = vector.shape_cast %210 : vector<1x8xf32> to vector<1x8x1xf32>
    %212 = tpu.reciprocal %211 {approx = true} : vector<1x8x1xf32> -> vector<1x8x1xf32>
    %213 = vector.broadcast %212 : vector<1x8x1xf32> to vector<1x8x8xf32>
    %214 = arith.mulf %209, %213 : vector<1x8x8xf32>
    %215 = arith.truncf %214 : vector<1x8x8xf32> to vector<1x8x8xbf16>
    "tpu.trace_start"() <{level = 10 : i32, message = "bqk,bkd->bqd"}> : () -> ()
    %cst_62 = arith.constant dense<0.000000e+00> : vector<1x8x128xf32>
    %216 = tpu.matmul %215, %29, %cst_62 {dimension_numbers = #tpu.dot_dimension_numbers<[2], [1], [1], [2], [0, 0, 0, 1, 1, 2], [0], [0]>} : vector<1x8x8xbf16>, vector<1x8x128xbf16>, vector<1x8x128xf32> -> vector<1x8x128xf32>
    %cst_63 = arith.constant 0.000000e+00 : f32
    "tpu.trace_stop"() : () -> ()
    %217 = vector.shape_cast %195 : vector<1x1x128xi1> to vector<1x1x128xi1>
    %218 = vector.broadcast %217 : vector<1x1x128xi1> to vector<1x8x128xi1>
    %219 = vector.broadcast %cst_63 : f32 to vector<1x8x128xf32>
    %220 = arith.select %218, %216, %219 : vector<1x8x128xi1>, vector<1x8x128xf32>
    %221 = arith.addf %190, %220 : vector<1x8x128xf32>
    %222 = vector.shape_cast %221 : vector<1x8x128xf32> to vector<8x128xf32>
    %223 = arith.truncf %222 : vector<8x128xf32> to vector<8x128xbf16>
    %c0_64 = arith.constant 0 : index
    %c0_65 = arith.constant 0 : index
    %224 = vector.load %arg5[%c0_64, %c0_65] : memref<128x120xbf16, #tpu.memory_space<vmem>>, vector<128x120xbf16>
    %cst_66 = arith.constant dense<0.000000e+00> : vector<8x120xf32>
    %225 = tpu.matmul %223, %224, %cst_66 {dimension_numbers = #tpu.dot_dimension_numbers<[1], [0], [0], [1], [0, 0, 1, 1], [], []>} : vector<8x128xbf16>, vector<128x120xbf16>, vector<8x120xf32> -> vector<8x120xf32>
    %c0_67 = arith.constant 0 : index
    %c0_68 = arith.constant 0 : index
    %226 = vector.load %arg6[%c0_67, %c0_68] : memref<1x120xf32, #tpu.memory_space<vmem>>, vector<1x120xf32>
    %227 = vector.broadcast %226 : vector<1x120xf32> to vector<8x120xf32>
    %228 = arith.addf %225, %227 : vector<8x120xf32>
    %229 = arith.addf %0, %228 : vector<8x120xf32>
    %c0_69 = arith.constant 0 : index
    %c0_70 = arith.constant 0 : index
    %230 = vector.load %arg3[%c0_69, %c0_70] : memref<1x120xf32, #tpu.memory_space<vmem>>, vector<1x120xf32>
    %cst_71 = arith.constant dense<0.000000e+00> : vector<8xf32>
    %231 = vector.multi_reduction <add>, %229, %cst_71 [1] : vector<8x120xf32> to vector<8xf32>
    %232 = vector.shape_cast %231 : vector<8xf32> to vector<8x1xf32>
    %cst_72 = arith.constant 1.200000e+02 : f32
    %233 = vector.broadcast %cst_72 : f32 to vector<8x1xf32>
    %234 = arith.divf %232, %233 : vector<8x1xf32>
    %235 = vector.broadcast %234 : vector<8x1xf32> to vector<8x120xf32>
    %236 = arith.subf %229, %235 : vector<8x120xf32>
    %237 = arith.mulf %236, %236 : vector<8x120xf32>
    %cst_73 = arith.constant dense<0.000000e+00> : vector<8xf32>
    %238 = vector.multi_reduction <add>, %237, %cst_73 [1] : vector<8x120xf32> to vector<8xf32>
    %239 = vector.shape_cast %238 : vector<8xf32> to vector<8x1xf32>
    %cst_74 = arith.constant 1.200000e+02 : f32
    %240 = vector.broadcast %cst_74 : f32 to vector<8x1xf32>
    %241 = arith.divf %239, %240 : vector<8x1xf32>
    %cst_75 = arith.constant 9.99999974E-6 : f32
    %242 = vector.broadcast %cst_75 : f32 to vector<8x1xf32>
    %243 = arith.addf %241, %242 : vector<8x1xf32>
    %244 = math.rsqrt %243 : vector<8x1xf32>
    %245 = vector.broadcast %244 : vector<8x1xf32> to vector<8x120xf32>
    %246 = arith.mulf %236, %245 : vector<8x120xf32>
    %247 = vector.broadcast %230 : vector<1x120xf32> to vector<8x120xf32>
    %248 = arith.mulf %246, %247 : vector<8x120xf32>
    %249 = arith.truncf %248 : vector<8x120xf32> to vector<8x120xbf16>
    %c0_76 = arith.constant 0 : index
    %c0_77 = arith.constant 0 : index
    %250 = vector.load %arg7[%c0_76, %c0_77] : memref<120x512xbf16, #tpu.memory_space<vmem>>, vector<120x512xbf16>
    %cst_78 = arith.constant dense<0.000000e+00> : vector<8x512xf32>
    %251 = tpu.matmul %249, %250, %cst_78 {dimension_numbers = #tpu.dot_dimension_numbers<[1], [0], [0], [1], [0, 0, 1, 1], [], []>} : vector<8x120xbf16>, vector<120x512xbf16>, vector<8x512xf32> -> vector<8x512xf32>
    %cst_79 = arith.constant 5.000000e-01 : f32
    %252 = vector.broadcast %cst_79 : f32 to vector<8x512xf32>
    %253 = arith.mulf %252, %251 : vector<8x512xf32>
    %cst_80 = arith.constant 0.707106769 : f32
    %254 = vector.broadcast %cst_80 : f32 to vector<8x512xf32>
    %255 = arith.mulf %251, %254 : vector<8x512xf32>
    %256 = math.erf %255 : vector<8x512xf32>
    %cst_81 = arith.constant 1.000000e+00 : f32
    %257 = vector.broadcast %cst_81 : f32 to vector<8x512xf32>
    %258 = arith.addf %257, %256 : vector<8x512xf32>
    %259 = arith.mulf %253, %258 : vector<8x512xf32>
    %260 = arith.truncf %259 : vector<8x512xf32> to vector<8x512xbf16>
    %c0_82 = arith.constant 0 : index
    %c0_83 = arith.constant 0 : index
    %261 = vector.load %arg8[%c0_82, %c0_83] : memref<512x120xbf16, #tpu.memory_space<vmem>>, vector<512x120xbf16>
    %cst_84 = arith.constant dense<0.000000e+00> : vector<8x120xf32>
    %262 = tpu.matmul %260, %261, %cst_84 {dimension_numbers = #tpu.dot_dimension_numbers<[1], [0], [0], [1], [0, 0, 1, 1], [], []>} : vector<8x512xbf16>, vector<512x120xbf16>, vector<8x120xf32> -> vector<8x120xf32>
    %263 = arith.addf %229, %262 : vector<8x120xf32>
    %c0_85 = arith.constant 0 : index
    %c0_86 = arith.constant 0 : index
    %264 = vector.load %arg9[%c0_85, %c0_86] : memref<8x120xf32, #tpu.memory_space<vmem>>, vector<8x120xf32>
    tpu.vector_store %arg9[%c0_85, %c0_86], %263 {strides = array<i32>} : memref<8x120xf32, #tpu.memory_space<vmem>>, vector<8x120xf32>,
    return
  }
  func.func @transform_0(%arg0: i32) -> (i32, i32) {
    %c0_i32 = arith.constant 0 : i32
    %c0_i32_0 = arith.constant 0 : i32
    return %arg0, %c0_i32 : i32, i32
  }
  func.func @transform_1(%arg0: i32) -> (i32, i32) {
    %c0_i32 = arith.constant 0 : i32
    %c0_i32_0 = arith.constant 0 : i32
    %c0_i32_1 = arith.constant 0 : i32
    return %c0_i32, %c0_i32_0 : i32, i32
  }
  func.func @transform_2(%arg0: i32) -> (i32, i32) {
    %c0_i32 = arith.constant 0 : i32
    %c0_i32_0 = arith.constant 0 : i32
    %c0_i32_1 = arith.constant 0 : i32
    return %c0_i32, %c0_i32_0 : i32, i32
  }
  func.func @transform_3(%arg0: i32) -> (i32, i32) {
    %c0_i32 = arith.constant 0 : i32
    %c0_i32_0 = arith.constant 0 : i32
    %c0_i32_1 = arith.constant 0 : i32
    return %c0_i32, %c0_i32_0 : i32, i32
  }
  func.func @transform_4(%arg0: i32) -> (i32, i32) {
    %c0_i32 = arith.constant 0 : i32
    %c0_i32_0 = arith.constant 0 : i32
    %c0_i32_1 = arith.constant 0 : i32
    return %c0_i32, %c0_i32_0 : i32, i32
  }
  func.func @transform_5(%arg0: i32) -> (i32, i32) {
    %c0_i32 = arith.constant 0 : i32
    %c0_i32_0 = arith.constant 0 : i32
    %c0_i32_1 = arith.constant 0 : i32
    return %c0_i32, %c0_i32_0 : i32, i32
  }
  func.func @transform_6(%arg0: i32) -> (i32, i32) {
    %c0_i32 = arith.constant 0 : i32
    %c0_i32_0 = arith.constant 0 : i32
    %c0_i32_1 = arith.constant 0 : i32
    return %c0_i32, %c0_i32_0 : i32, i32
  }
  func.func @transform_7(%arg0: i32) -> (i32, i32) {
    %c0_i32 = arith.constant 0 : i32
    %c0_i32_0 = arith.constant 0 : i32
    %c0_i32_1 = arith.constant 0 : i32
    return %c0_i32, %c0_i32_0 : i32, i32
  }
  func.func @transform_8(%arg0: i32) -> (i32, i32) {
    %c0_i32 = arith.constant 0 : i32
    %c0_i32_0 = arith.constant 0 : i32
    return %arg0, %c0_i32 : i32, i32
  }
}

</mosaic_0001>

<llo_original>
// kernel: block_forward.1
$region0: #{block_forward.1}
  #allocation0 [shape = 'u32[]', space=smem, size = 0x4, offset = 0x4, fixed_abs, tag = 'smem constant byte address 0x4 - core index']
  #allocation1 [shape = 'u32[144,128]{1,0:T(1,128)}', space=vmem, size = 0x12000, scoped, tag = 'internal scratch']
  %s0 = inlined_call_operand.vmem [shape: f32[16,120], index: 0, kind: input, shape index: {}]
  %s1 = inlined_call_operand.vmem [shape: f32[1,120], index: 1, kind: input, shape index: {}]
  %s2 = inlined_call_operand.vmem [shape: f32[1,120], index: 2, kind: input, shape index: {}]
  %s3 = inlined_call_operand.vmem [shape: bf16[120,384], index: 3, kind: input, shape index: {}]
  %s4 = inlined_call_operand.vmem [shape: bf16[128,120], index: 4, kind: input, shape index: {}]
  %s5 = inlined_call_operand.vmem [shape: f32[1,120], index: 5, kind: input, shape index: {}]
  %s6 = inlined_call_operand.vmem [shape: bf16[120,512], index: 6, kind: input, shape index: {}]
  %s7 = inlined_call_operand.vmem [shape: bf16[512,120], index: 7, kind: input, shape index: {}]
  %s8 = inlined_call_operand.hbm [shape: f32[16,120], index: 8, kind: output, shape index: {}]
  %s9 = sld [smem:[#allocation0]]
  $region65: #{block_forward.1} parent=0
    _
  %s11 = ssub.s32 1, %s9
  %s12 = scalar_select 0, %s11, %s9
  $region1: #{block_forward.1} parent=0
    #allocation2 [shape = 'u8[8192]{0}', space=vmem, size = 0x2000, scoped, tag = 'output window, operand 0']
    #allocation3 [shape = 's32[2]{0}', space=sflag, size = 0x8, scoped, tag = 'scoped memory for block_forward.1']
    %13 = vsyncpa [#allocation3], 0
    %s14 = scalar_lea.sflag [#allocation3], 1
    %15 = vsyncpa %s14, 0
    loop: start=0, step=1, limit=4
    $region2: #{block_forward.1} parent=1 // loop_pre_header
      _
    $region3: #{block_forward.1} parent=1 // loop_header
      %s17 = sphi 0, %s21
      %p18 = scmp.ge.s32.totalorder %s17, 4
      %s27 = sphi 0, %s29
      %s30 = sphi 0, %s27
      %s31 = sphi 0, %s30
      %s47 = sphi 0, %s31
      %s51 = sphi 0, %s51
      %s53 = sphi 0, %s51
      %s54 = sphi 0, %s53
      %s68 = sphi 0, %s54
      %s72 = sphi 0, %s72
      %s74 = sphi 0, %s72
      %s75 = sphi 0, %s74
      %s89 = sphi 0, %s75
      %s93 = sphi 0, %s93
      %s95 = sphi 0, %s93
      %s96 = sphi 0, %s95
      %s110 = sphi 0, %s96
      %s114 = sphi 0, %s114
      %s116 = sphi 0, %s114
      %s117 = sphi 0, %s116
      %s131 = sphi 0, %s117
      %s135 = sphi 0, %s135
      %s137 = sphi 0, %s135
      %s138 = sphi 0, %s137
      %s152 = sphi 0, %s138
      %s156 = sphi 0, %s156
      %s158 = sphi 0, %s156
      %s159 = sphi 0, %s158
      %s173 = sphi 0, %s159
      %s177 = sphi 0, %s177
      %s179 = sphi 0, %s177
      %s180 = sphi 0, %s179
      %s194 = sphi 0, %s180
      %s200 = sphi 0, %s202
      %s203 = sphi 0, %s200
      %s204 = sphi 0, %s203
      %s220 = sphi 0, %s204
    $region4: #{block_forward.1} parent=1 // loop_header_branch
      %20 = sbr.rel (%p18) target = $region8
    $region5: #{block_forward.1} parent=1 // loop_body
      %s22 = ssub.s32 %s17, 1
      %s23 = ssub.s32 %s17, 2
      %s24 = sadd.s32 %s17, 1
      %s25 = ssub.s32 %s17, %s24
      %p26 = scmp.eq.s32.totalorder %s25, 0
      %s28 = sadd.s32 %s27, 1
      %s29 = scalar_select %p26, %s27, %s28
      %p32 = pneg %p26
      %p33 = scmp.eq.s32.totalorder %s17, 1
      %p34 = por %p32, %p33
      %p35 = scmp.ne.s32.totalorder %s27, %s30
      %p36 = scmp.eq.s32.totalorder %s17, 0
      %p37 = por %p35, %p36
      %p38 = scmp.ne.s32.totalorder %s27, %s30
      %p39 = scmp.eq.s32.totalorder %s22, 1
      %p40 = por %p38, %p39
      %p41 = scmp.ne.s32.totalorder %s30, %s31
      %p42 = scmp.eq.s32.totalorder %s22, 0
      %p43 = por %p41, %p42
      %p44 = scmp.ne.s32.totalorder %s30, %s31
      %p45 = scmp.eq.s32.totalorder %s23, 1
      %p46 = por %p44, %p45
      %p48 = scmp.ne.s32.totalorder %s31, %s47
      %p49 = scmp.eq.s32.totalorder %s23, 0
      %p50 = por %p48, %p49
      %s52 = sadd.s32 %s51, 1
      %p55 = scmp.eq.s32.totalorder %s17, 1
      %p56 = scmp.ne.s32.totalorder %s51, %s53
      %p57 = scmp.eq.s32.totalorder %s17, 0
      %p58 = por %p56, %p57
      %p59 = scmp.ne.s32.totalorder %s51, %s53
      %p60 = scmp.eq.s32.totalorder %s22, 1
      %p61 = por %p59, %p60
      %p62 = scmp.ne.s32.totalorder %s53, %s54
      %p63 = scmp.eq.s32.totalorder %s22, 0
      %p64 = por %p62, %p63
      %p65 = scmp.ne.s32.totalorder %s53, %s54
      %p66 = scmp.eq.s32.totalorder %s23, 1
      %p67 = por %p65, %p66
      %p69 = scmp.ne.s32.totalorder %s54, %s68
      %p70 = scmp.eq.s32.totalorder %s23, 0
      %p71 = por %p69, %p70
      %s73 = sadd.s32 %s72, 1
      %p76 = scmp.eq.s32.totalorder %s17, 1
      %p77 = scmp.ne.s32.totalorder %s72, %s74
      %p78 = scmp.eq.s32.totalorder %s17, 0
      %p79 = por %p77, %p78
      %p80 = scmp.ne.s32.totalorder %s72, %s74
      %p81 = scmp.eq.s32.totalorder %s22, 1
      %p82 = por %p80, %p81
      %p83 = scmp.ne.s32.totalorder %s74, %s75
      %p84 = scmp.eq.s32.totalorder %s22, 0
      %p85 = por %p83, %p84
      %p86 = scmp.ne.s32.totalorder %s74, %s75
      %p87 = scmp.eq.s32.totalorder %s23, 1
      %p88 = por %p86, %p87
      %p90 = scmp.ne.s32.totalorder %s75, %s89
      %p91 = scmp.eq.s32.totalorder %s23, 0
      %p92 = por %p90, %p91
      %s94 = sadd.s32 %s93, 1
      %p97 = scmp.eq.s32.totalorder %s17, 1
      %p98 = scmp.ne.s32.totalorder %s93, %s95
      %p99 = scmp.eq.s32.totalorder %s17, 0
      %p100 = por %p98, %p99
      %p101 = scmp.ne.s32.totalorder %s93, %s95
      %p102 = scmp.eq.s32.totalorder %s22, 1
      %p103 = por %p101, %p102
      %p104 = scmp.ne.s32.totalorder %s95, %s96
      %p105 = scmp.eq.s32.totalorder %s22, 0
      %p106 = por %p104, %p105
      %p107 = scmp.ne.s32.totalorder %s95, %s96
      %p108 = scmp.eq.s32.totalorder %s23, 1
      %p109 = por %p107, %p108
      %p111 = scmp.ne.s32.totalorder %s96, %s110
      %p112 = scmp.eq.s32.totalorder %s23, 0
      %p113 = por %p111, %p112
      %s115 = sadd.s32 %s114, 1
      %p118 = scmp.eq.s32.totalorder %s17, 1
      %p119 = scmp.ne.s32.totalorder %s114, %s116
      %p120 = scmp.eq.s32.totalorder %s17, 0
      %p121 = por %p119, %p120
      %p122 = scmp.ne.s32.totalorder %s114, %s116
      %p123 = scmp.eq.s32.totalorder %s22, 1
      %p124 = por %p122, %p123
      %p125 = scmp.ne.s32.totalorder %s116, %s117
      %p126 = scmp.eq.s32.totalorder %s22, 0
      %p127 = por %p125, %p126
      %p128 = scmp.ne.s32.totalorder %s116, %s117
      %p129 = scmp.eq.s32.totalorder %s23, 1
      %p130 = por %p128, %p129
      %p132 = scmp.ne.s32.totalorder %s117, %s131
      %p133 = scmp.eq.s32.totalorder %s23, 0
      %p134 = por %p132, %p133
      %s136 = sadd.s32 %s135, 1
      %p139 = scmp.eq.s32.totalorder %s17, 1
      %p140 = scmp.ne.s32.totalorder %s135, %s137
      %p141 = scmp.eq.s32.totalorder %s17, 0
      %p142 = por %p140, %p141
      %p143 = scmp.ne.s32.totalorder %s135, %s137
      %p144 = scmp.eq.s32.totalorder %s22, 1
      %p145 = por %p143, %p144
      %p146 = scmp.ne.s32.totalorder %s137, %s138
      %p147 = scmp.eq.s32.totalorder %s22, 0
      %p148 = por %p146, %p147
      %p149 = scmp.ne.s32.totalorder %s137, %s138
      %p150 = scmp.eq.s32.totalorder %s23, 1
      %p151 = por %p149, %p150
      %p153 = scmp.ne.s32.totalorder %s138, %s152
      %p154 = scmp.eq.s32.totalorder %s23, 0
      %p155 = por %p153, %p154
      %s157 = sadd.s32 %s156, 1
      %p160 = scmp.eq.s32.totalorder %s17, 1
      %p161 = scmp.ne.s32.totalorder %s156, %s158
      %p162 = scmp.eq.s32.totalorder %s17, 0
      %p163 = por %p161, %p162
      %p164 = scmp.ne.s32.totalorder %s156, %s158
      %p165 = scmp.eq.s32.totalorder %s22, 1
      %p166 = por %p164, %p165
      %p167 = scmp.ne.s32.totalorder %s158, %s159
      %p168 = scmp.eq.s32.totalorder %s22, 0
      %p169 = por %p167, %p168
      %p170 = scmp.ne.s32.totalorder %s158, %s159
      %p171 = scmp.eq.s32.totalorder %s23, 1
      %p172 = por %p170, %p171
      %p174 = scmp.ne.s32.totalorder %s159, %s173
      %p175 = scmp.eq.s32.totalorder %s23, 0
      %p176 = por %p174, %p175
      %s178 = sadd.s32 %s177, 1
      %p181 = scmp.eq.s32.totalorder %s17, 1
      %p182 = scmp.ne.s32.totalorder %s177, %s179
      %p183 = scmp.eq.s32.totalorder %s17, 0
      %p184 = por %p182, %p183
      %p185 = scmp.ne.s32.totalorder %s177, %s179
      %p186 = scmp.eq.s32.totalorder %s22, 1
      %p187 = por %p185, %p186
      %p188 = scmp.ne.s32.totalorder %s179, %s180
      %p189 = scmp.eq.s32.totalorder %s22, 0
      %p190 = por %p188, %p189
      %p191 = scmp.ne.s32.totalorder %s179, %s180
      %p192 = scmp.eq.s32.totalorder %s23, 1
      %p193 = por %p191, %p192
      %p195 = scmp.ne.s32.totalorder %s180, %s194
      %p196 = scmp.eq.s32.totalorder %s23, 0
      %p197 = por %p195, %p196
      %s198 = ssub.s32 %s17, %s24
      %p199 = scmp.eq.s32.totalorder %s198, 0
      %s201 = sadd.s32 %s200, 1
      %s202 = scalar_select %p199, %s200, %s201
      %p205 = pneg %p199
      %p206 = scmp.eq.s32.totalorder %s17, 1
      %p207 = por %p205, %p206
      %p208 = scmp.ne.s32.totalorder %s200, %s203
      %p209 = scmp.eq.s32.totalorder %s17, 0
      %p210 = por %p208, %p209
      %p211 = scmp.ne.s32.totalorder %s200, %s203
      %p212 = scmp.eq.s32.totalorder %s22, 1
      %p213 = por %p211, %p212
      %p214 = scmp.ne.s32.totalorder %s203, %s204
      %p215 = scmp.eq.s32.totalorder %s22, 0
      %p216 = por %p214, %p215
      %p217 = scmp.ne.s32.totalorder %s203, %s204
      %p218 = scmp.eq.s32.totalorder %s23, 1
      %p219 = por %p217, %p218
      %p221 = scmp.ne.s32.totalorder %s204, %s220
      %p222 = scmp.eq.s32.totalorder %s23, 0
      %p223 = por %p221, %p222
      %p224 = scmp.le.s32.totalorder 1, %s17
      %p225 = scmp.lt.s32.totalorder %s17, 3
      %p226 = pnand %p224, %p225
      %p227 = pneg %p226
      // Predicated region
      $region9: #{block_forward.1} parent=5 // pred_check
        _
      $region10: #{block_forward.1} parent=5 // pred_check_branch
        %229 = sbr.rel (%p226) target = $region12
      $region11: #{block_forward.1} parent=5 // pred_region
        %s230 = ssub.s32 %s17, 1
        // Predicated region
        $region13: #{block_forward.1} parent=11 // pred_check
          %p231 = pneg %p64
        $region14: #{block_forward.1} parent=11 // pred_check_branch
          %233 = sbr.rel (%p231) target = $region16
        $region15: #{block_forward.1} parent=11 // pred_region
          _
        $region16: #{block_forward.1} parent=11 // pred_fallthru
          _
        // Predicated region
        $region17: #{block_forward.1} parent=11 // pred_check
          %p234 = pneg %p85
        $region18: #{block_forward.1} parent=11 // pred_check_branch
          %236 = sbr.rel (%p234) target = $region20
        $region19: #{block_forward.1} parent=11 // pred_region
          _
        $region20: #{block_forward.1} parent=11 // pred_fallthru
          _
        // Predicated region
        $region21: #{block_forward.1} parent=11 // pred_check
          %p237 = pneg %p106
        $region22: #{block_forward.1} parent=11 // pred_check_branch
          %239 = sbr.rel (%p237) target = $region24
        $region23: #{block_forward.1} parent=11 // pred_region
          _
        $region24: #{block_forward.1} parent=11 // pred_fallthru
          _
        // Predicated region
        $region25: #{block_forward.1} parent=11 // pred_check
          %p240 = pneg %p127
        $region26: #{block_forward.1} parent=11 // pred_check_branch
          %242 = sbr.rel (%p240) target = $region28
        $region27: #{block_forward.1} parent=11 // pred_region
          _
        $region28: #{block_forward.1} parent=11 // pred_fallthru
          _
        // Predicated region
        $region29: #{block_forward.1} parent=11 // pred_check
          %p243 = pneg %p148
        $region30: #{block_forward.1} parent=11 // pred_check_branch
          %245 = sbr.rel (%p243) target = $region32
        $region31: #{block_forward.1} parent=11 // pred_region
          _
        $region32: #{block_forward.1} parent=11 // pred_fallthru
          _
        // Predicated region
        $region33: #{block_forward.1} parent=11 // pred_check
          %p246 = pneg %p169
        $region34: #{block_forward.1} parent=11 // pred_check_branch
          %248 = sbr.rel (%p246) target = $region36
        $region35: #{block_forward.1} parent=11 // pred_region
          _
        $region36: #{block_forward.1} parent=11 // pred_fallthru
          _
        // Predicated region
        $region37: #{block_forward.1} parent=11 // pred_check
          %p249 = pneg %p190
        $region38: #{block_forward.1} parent=11 // pred_check_branch
          %251 = sbr.rel (%p249) target = $region40
        $region39: #{block_forward.1} parent=11 // pred_region
          _
        $region40: #{block_forward.1} parent=11 // pred_fallthru
          _
      $region12: #{block_forward.1} parent=5 // pred_fallthru
        _
      %p252 = scmp.lt.s32.totalorder %s17, 2
      // Predicated region
      $region41: #{block_forward.1} parent=5 // pred_check
        %p253 = pneg %p252
      $region42: #{block_forward.1} parent=5 // pred_check_branch
        %255 = sbr.rel (%p253) target = $region44
      $region43: #{block_forward.1} parent=5 // pred_region
        // Predicated region
        $region45: #{block_forward.1} parent=43 // pred_check
          %p256 = pneg %p37
        $region46: #{block_forward.1} parent=43 // pred_check_branch
          %258 = sbr.rel (%p256) target = $region48
        $region47: #{block_forward.1} parent=43 // pred_region
          %p259 = scmp.lt.s32.totalorder %s17, 1
          %s260 = scalar_select %p259, %s17, 1
          %s261 = smul.addr %s260, 8
          %s262 = scalar_lea.vmem %s0, %s261
        $region48: #{block_forward.1} parent=43 // pred_fallthru
          _
      $region44: #{block_forward.1} parent=5 // pred_fallthru
        _
      %p263 = scmp.le.s32.totalorder 1, %s17
      %p264 = scmp.lt.s32.totalorder %s17, 3
      %p265 = pnand %p263, %p264
      %p266 = pneg %p265
      // Predicated region
      $region49: #{block_forward.1} parent=5 // pred_check
        _
      $region50: #{block_forward.1} parent=5 // pred_check_branch
        %268 = sbr.rel (%p265) target = $region52
      $region51: #{block_forward.1} parent=5 // pred_region
        %s269 = ssub.s32 %s17, 1
        %p270 = scmp.lt.s32.totalorder %s22, 1
        %s271 = scalar_select %p270, %s22, 1
        %s272 = smul.addr %s271, 8
        %s273 = scalar_lea.vmem %s0, %s272
        %p274 = pneg %p43
        %p275 = pneg %p40
        %p276 = pneg %p64
        %p277 = pneg %p61
        %p278 = pneg %p85
        %p279 = pneg %p82
        %p280 = pneg %p106
        %p281 = pneg %p103
        %p282 = pneg %p127
        %p283 = pneg %p124
        %p284 = pneg %p148
        %p285 = pneg %p145
        %p286 = pneg %p169
        %p287 = pneg %p166
        %p288 = pneg %p190
        %p289 = pneg %p187
        %p290 = pneg %p216
        %p291 = pneg %p213
        %s292 = sand.u32 %s203, 1
        %s293 = scalar_lea.sflag [#allocation3], %s292
        %s294 = sand.u32 %s203, 1
        %s295 = smul.addr %s294, 8
        %s296 = scalar_lea.vmem [#allocation2], %s295
        %p297 = scmp.lt.s32.totalorder %s22, 1
        %s298 = scalar_select %p297, %s22, 1
        %s299 = smul.addr %s298, 8
        %s300 = scalar_lea.vmem %s0, %s299
        %v302 = vld [vmem:[%s300] sm:$0xff]
        %v303 = vld [vmem:[%s1] sm:$0x1]
        %vm304 = vcmask 982016
        %v305 = vsel %vm304, %v302, 0.0
        %306 = vadd.xlane.f32.xlu0 %v305
        %v307 = vpop.xlane.xlu0 %306
        %v308 = vrcp.pop 120.0
        %v309 = vmul.f32 %v307, %v308
        %v310 = vsub.f32 %v302, %v309
        %v311 = vmul.f32 %v310, %v310
        %v312 = vsel %vm304, %v311, 0.0
        %313 = vadd.xlane.f32.xlu0 %v312
        %v314 = vpop.xlane.xlu0 %313
        %v315 = vmul.f32 %v314, %v308
        %v316 = vadd.f32 %v315, 1e-05
        %v317 = vrsqrt.pop %v316
        %v318 = vmul.f32 %v310, %v317
        %v320 = vlaneseq
        %v321 = vshrl.u32 %v320, 7
        %v322 = vsub.s32 0, %v321
        %v323 = vrot.slane %v303, %v322
        %v325 = vmul.f32 %v318, %v323
        %v326 = vpack.c.bf16 %v325, %v325
        %v327 = vld [vmem:[%s3] sm:$0xff]
        %v328 = vld [vmem:[%s3 + $0x8] sm:$0xf]
        %v329 = vld [vmem:[%s3 + $0xc] sm:$0xff]
        %v330 = vld [vmem:[%s3 + $0x14] sm:$0xf]
        %v331 = vld [vmem:[%s3 + $0x18] sm:$0xff]
        %v332 = vld [vmem:[%s3 + $0x20] sm:$0xf]
        %v333 = vld [vmem:[%s3 + $0x24] sm:$0xff]
        %v334 = vld [vmem:[%s3 + $0x2c] sm:$0xf]
        %v335 = vld [vmem:[%s3 + $0x30] sm:$0xff]
        %v336 = vld [vmem:[%s3 + $0x38] sm:$0xf]
        %v337 = vld [vmem:[%s3 + $0x3c] sm:$0xff]
        %v338 = vld [vmem:[%s3 + $0x44] sm:$0xf]
        %v339 = vld [vmem:[%s3 + $0x48] sm:$0xff]
        %v340 = vld [vmem:[%s3 + $0x50] sm:$0xf]
        %v341 = vld [vmem:[%s3 + $0x54] sm:$0xff]
        %v342 = vld [vmem:[%s3 + $0x5c] sm:$0xf]
        %v343 = vld [vmem:[%s3 + $0x60] sm:$0xff]
        %v344 = vld [vmem:[%s3 + $0x68] sm:$0xf]
        %v345 = vld [vmem:[%s3 + $0x6c] sm:$0xff]
        %v346 = vld [vmem:[%s3 + $0x74] sm:$0xf]
        %v347 = vld [vmem:[%s3 + $0x78] sm:$0xff]
        %v348 = vld [vmem:[%s3 + $0x80] sm:$0xf]
        %v349 = vld [vmem:[%s3 + $0x84] sm:$0xff]
        %v350 = vld [vmem:[%s3 + $0x8c] sm:$0xf]
        %v351 = vld [vmem:[%s3 + $0x90] sm:$0xff]
        %v352 = vld [vmem:[%s3 + $0x98] sm:$0xf]
        %v353 = vld [vmem:[%s3 + $0x9c] sm:$0xff]
        %v354 = vld [vmem:[%s3 + $0xa4] sm:$0xf]
        %v355 = vld [vmem:[%s3 + $0xa8] sm:$0xff]
        %v356 = vld [vmem:[%s3 + $0xb0] sm:$0xf]
        %v387 = vunpack.c.l.b16 %v327
        %v388 = vunpack.c.h.b16 %v327
        %v389 = vunpack.c.l.b16 %v328
        %v390 = vunpack.c.l.b16 %v329
        %v391 = vunpack.c.h.b16 %v329
        %v392 = vunpack.c.l.b16 %v330
        %v393 = vunpack.c.l.b16 %v331
        %v394 = vunpack.c.h.b16 %v331
        %v395 = vunpack.c.l.b16 %v332
        %v396 = vunpack.c.l.b16 %v333
        %v397 = vunpack.c.h.b16 %v333
        %v398 = vunpack.c.l.b16 %v334
        %v399 = vunpack.c.l.b16 %v335
        %v400 = vunpack.c.h.b16 %v335
        %v401 = vunpack.c.l.b16 %v336
        %v402 = vunpack.c.l.b16 %v337
        %v403 = vunpack.c.h.b16 %v337
        %v404 = vunpack.c.l.b16 %v338
        %v405 = vunpack.c.l.b16 %v339
        %v406 = vunpack.c.h.b16 %v339
        %v407 = vunpack.c.l.b16 %v340
        %v408 = vunpack.c.l.b16 %v341
        %v409 = vunpack.c.h.b16 %v341
        %v410 = vunpack.c.l.b16 %v342
        %v411 = vunpack.c.l.b16 %v343
        %v412 = vunpack.c.h.b16 %v343
        %v413 = vunpack.c.l.b16 %v344
        %v414 = vunpack.c.l.b16 %v345
        %v415 = vunpack.c.h.b16 %v345
        %v416 = vunpack.c.l.b16 %v346
        %v417 = vunpack.c.l.b16 %v347
        %v418 = vunpack.c.h.b16 %v347
        %v419 = vunpack.c.l.b16 %v348
        %v420 = vunpack.c.l.b16 %v349
        %v421 = vunpack.c.h.b16 %v349
        %v422 = vunpack.c.l.b16 %v350
        %v423 = vunpack.c.l.b16 %v351
        %v424 = vunpack.c.h.b16 %v351
        %v425 = vunpack.c.l.b16 %v352
        %v426 = vunpack.c.l.b16 %v353
        %v427 = vunpack.c.h.b16 %v353
        %v428 = vunpack.c.l.b16 %v354
        %v429 = vunpack.c.l.b16 %v355
        %v430 = vunpack.c.h.b16 %v355
        %v431 = vunpack.c.l.b16 %v356
        %v432 = vpack.c.b16 %v390, %v387
        %v433 = vpack.c.b16 %v391, %v388
        %v434 = vpack.c.b16 %v392, %v389
        %v435 = vpack.c.b16 %v396, %v393
        %v436 = vpack.c.b16 %v397, %v394
        %v437 = vpack.c.b16 %v398, %v395
        %v438 = vpack.c.b16 %v402, %v399
        %v439 = vpack.c.b16 %v403, %v400
        %v440 = vpack.c.b16 %v404, %v401
        %v441 = vpack.c.b16 %v408, %v405
        %v442 = vpack.c.b16 %v409, %v406
        %v443 = vpack.c.b16 %v410, %v407
        %v444 = vpack.c.b16 %v414, %v411
        %v445 = vpack.c.b16 %v415, %v412
        %v446 = vpack.c.b16 %v416, %v413
        %v447 = vpack.c.b16 %v420, %v417
        %v448 = vpack.c.b16 %v421, %v418
        %v449 = vpack.c.b16 %v422, %v419
        %v450 = vpack.c.b16 %v426, %v423
        %v451 = vpack.c.b16 %v427, %v424
        %v452 = vpack.c.b16 %v428, %v425
        %v453 = vpack.c.b16 %v429, %v429
        %v454 = vpack.c.b16 %v430, %v430
        %v455 = vpack.c.b16 %v431, %v431
        %v478 = vsel %vm304, %v326, 0
        %vm480 = vcmask 1043456
        %v482 = vsel %vm480, %v453, 0
        %v485 = vsel %vm480, %v454, 0
        %v488 = vsel %vm480, %v455, 0
        %490 = vmatprep.subr.bf16.mxu0 %v485
        %491 = vmatpush1.bf16.msra.mxu0 %v482
        %492 = vmatprep.subr.bf16.mxu0 %v451
        %493 = vmatpush1.bf16.msra.mxu0 %v450
        %494 = vmatprep.subr.bf16.mxu0 %v448
        %495 = vmatpush1.bf16.msra.mxu0 %v447
        %496 = vmatprep.subr.bf16.mxu0 %v445
        %497 = vmatpush1.bf16.msra.mxu0 %v444
        %498 = vmatprep.subr.bf16.mxu0 %v442
        %499 = vmatpush1.bf16.msra.mxu0 %v441
        %500 = vmatprep.subr.bf16.mxu0 %v439
        %501 = vmatpush1.bf16.msra.mxu0 %v438
        %502 = vmatprep.subr.bf16.mxu0 %v436
        %503 = vmatpush1.bf16.msra.mxu0 %v435
        %504 = vmatprep.subr.bf16.mxu0 %v433
        %505 = vmatpush1.bf16.msra.mxu0 %v432
        %506 = vmatprep.subr.bf16.mxu0 0
        %507 = vmatpush2.bf16.msra.mxu0 0
        %508 = vmatprep.subr.bf16.mxu0 0
        %509 = vmatpush2.bf16.msra.mxu0 0
        %510 = vmatprep.subr.bf16.mxu0 0
        %511 = vmatpush2.bf16.msra.mxu0 0
        %512 = vmatprep.subr.bf16.mxu0 0
        %513 = vmatpush2.bf16.msra.mxu0 0
        %514 = vmatprep.subr.bf16.mxu0 0
        %515 = vmatpush2.bf16.msra.mxu0 0
        %516 = vmatprep.subr.bf16.mxu0 0
        %517 = vmatpush2.bf16.msra.mxu0 0
        %518 = vmatprep.subr.bf16.mxu0 0
        %519 = vmatpush2.bf16.msra.mxu0 0
        %520 = vmatprep.subr.bf16.mxu0 0
        %521 = vmatpush2.bf16.msra.mxu0 0
        %522 = vmatprep.mubr.bf16.mxu0 0
        %523 = vmatmul.mubr.bf16.gmra.mxu0 %v478
        %v524 = vpop.f32.mrf.mxu0
        %v525 = vadd.f32 0.0, %v524
        %v526 = vpop.f32.mrf.mxu0
        %v527 = vadd.f32 0.0, %v526
        %v528 = vpop.f32.mrf.mxu0
        %v529 = vpop.f32.mrf.mxu0
        %530 = vdwg.mxu0
        %531 = vmatprep.subr.bf16.mxu0 0
        %532 = vmatpush1.bf16.msra.mxu0 %v488
        %533 = vmatprep.subr.bf16.mxu0 0
        %534 = vmatpush1.bf16.msra.mxu0 %v452
        %535 = vmatprep.subr.bf16.mxu0 0
        %536 = vmatpush1.bf16.msra.mxu0 %v449
        %537 = vmatprep.subr.bf16.mxu0 0
        %538 = vmatpush1.bf16.msra.mxu0 %v446
        %539 = vmatprep.subr.bf16.mxu0 0
        %540 = vmatpush1.bf16.msra.mxu0 %v443
        %541 = vmatprep.subr.bf16.mxu0 0
        %542 = vmatpush1.bf16.msra.mxu0 %v440
        %543 = vmatprep.subr.bf16.mxu0 0
        %544 = vmatpush1.bf16.msra.mxu0 %v437
        %545 = vmatprep.subr.bf16.mxu0 0
        %546 = vmatpush1.bf16.msra.mxu0 %v434
        %547 = vmatprep.subr.bf16.mxu0 0
        %548 = vmatpush2.bf16.msra.mxu0 0
        %549 = vmatprep.subr.bf16.mxu0 0
        %550 = vmatpush2.bf16.msra.mxu0 0
        %551 = vmatprep.subr.bf16.mxu0 0
        %552 = vmatpush2.bf16.msra.mxu0 0
        %553 = vmatprep.subr.bf16.mxu0 0
        %554 = vmatpush2.bf16.msra.mxu0 0
        %555 = vmatprep.subr.bf16.mxu0 0
        %556 = vmatpush2.bf16.msra.mxu0 0
        %557 = vmatprep.subr.bf16.mxu0 0
        %558 = vmatpush2.bf16.msra.mxu0 0
        %559 = vmatprep.subr.bf16.mxu0 0
        %560 = vmatpush2.bf16.msra.mxu0 0
        %561 = vmatprep.subr.bf16.mxu0 0
        %562 = vmatpush2.bf16.msra.mxu0 0
        %563 = vmatprep.mubr.bf16.mxu0 0
        %564 = vmatmul.mubr.bf16.gmra.mxu0 %v478
        %v565 = vpop.f32.mrf.mxu0
        %v566 = vadd.f32 0.0, %v565
        %v567 = vpop.f32.mrf.mxu0
        %v568 = vpop.f32.mrf.mxu0
        %v569 = vpop.f32.mrf.mxu0
        %570 = vdwg.mxu0
        %v571 = vpack.c.bf16 %v525, %v525
        %v572 = vpack.c.bf16 %v527, %v527
        %v573 = vpack.c.bf16 %v566, %v566
        %v574 = vlaneseq
        %v575 = vshrl.u32 %v574, 7
        %v576 = vlaneseq
        %v577 = vand.u32 %v576, 127
        %vm578 = vcmp.le.s32.totalorder %v577, %v575
        %vm579 = vcmp.ge.s32.totalorder %v577, 0
        %vm580 = vcmp.lt.s32.totalorder %v577, 20
        %vm581 = vmand %vm579, %vm580
        %v582 = vsel %vm581, 1, 0
        %vm583 = vcmp.eq.s32.totalorder %v582, 1
        %vm584 = vmpackc.low %vm583, %vm583
        %v585 = vsel %vm584, %v571, 0
        %586 = vmatprep.subr.bf16.mxu0 0
        %587 = vmatpush1.bf16.xpose.msra.mxu0 0
        %588 = vmatprep.subr.bf16.mxu0 0
        %589 = vmatpush1.bf16.xpose.msra.mxu0 0
        %590 = vmatprep.subr.bf16.mxu0 0
        %591 = vmatpush1.bf16.xpose.msra.mxu0 0
        %592 = vmatprep.subr.bf16.mxu0 0
        %593 = vmatpush1.bf16.xpose.msra.mxu0 0
        %594 = vmatprep.subr.bf16.mxu0 0
        %595 = vmatpush1.bf16.xpose.msra.mxu0 0
        %596 = vmatprep.subr.bf16.mxu0 0
        %597 = vmatpush1.bf16.xpose.msra.mxu0 0
        %598 = vmatprep.subr.bf16.mxu0 0
        %599 = vmatpush1.bf16.xpose.msra.mxu0 0
        %600 = vmatprep.subr.bf16.mxu0 0
        %601 = vmatpush1.bf16.xpose.msra.mxu0 %v572
        %602 = vmatprep.subr.bf16.mxu0 0
        %603 = vmatpush2.bf16.xpose.msra.mxu0 0
        %604 = vmatprep.subr.bf16.mxu0 0
        %605 = vmatpush2.bf16.xpose.msra.mxu0 0
        %606 = vmatprep.subr.bf16.mxu0 0
        %607 = vmatpush2.bf16.xpose.msra.mxu0 0
        %608 = vmatprep.subr.bf16.mxu0 0
        %609 = vmatpush2.bf16.xpose.msra.mxu0 0
        %610 = vmatprep.subr.bf16.mxu0 0
        %611 = vmatpush2.bf16.xpose.msra.mxu0 0
        %612 = vmatprep.subr.bf16.mxu0 0
        %613 = vmatpush2.bf16.xpose.msra.mxu0 0
        %614 = vmatprep.subr.bf16.mxu0 0
        %615 = vmatpush2.bf16.xpose.msra.mxu0 0
        %616 = vmatprep.subr.bf16.mxu0 0
        %617 = vmatpush2.bf16.xpose.msra.mxu0 0
        %618 = vmatprep.mubr.bf16.mxu0 0
        %619 = vmatmul.mubr.bf16.gmra.mxu0 %v585
        %v620 = vpop.f32.mrf.mxu0
        %v621 = vadd.f32 0.0, %v620
        %v622 = vpop.f32.mrf.mxu0
        %v623 = vpop.f32.mrf.mxu0
        %v624 = vpop.f32.mrf.mxu0
        %625 = vdwg.mxu0
        %v626 = vmul.f32 %v621, 0.2236068
        %v627 = vsel %vm578, %v626, -inf
        %vm628 = vcmask 64512
        %v629 = vsel %vm628, %v627, -inf
        %630 = vmax.xlane.f32.xlu0 %v629
        %v631 = vpop.xlane.xlu0 %630
        %v632 = vsub.f32 %v627, %v631
        %v633 = vmul.f32 %v632, 1.442695
        %v634 = vpow.pop %v633
        %v635 = vsel %vm628, %v634, 0.0
        %636 = vadd.xlane.f32.xlu0 %v635
        %v637 = vpop.xlane.xlu0 %636
        %v638 = vrcp.pop %v637
        %v639 = vmul.f32 %v634, %v638
        %v640 = vpack.c.bf16 %v639, %v639
        %v642 = vsel %vm628, %v640, 0
        %v645 = vsel %vm480, %v573, 0
        %647 = vmatprep.subr.bf16.mxu0 0
        %648 = vmatpush1.bf16.msra.mxu0 0
        %649 = vmatprep.subr.bf16.mxu0 0
        %650 = vmatpush1.bf16.msra.mxu0 0
        %651 = vmatprep.subr.bf16.mxu0 0
        %652 = vmatpush1.bf16.msra.mxu0 0
        %653 = vmatprep.subr.bf16.mxu0 0
        %654 = vmatpush1.bf16.msra.mxu0 0
        %655 = vmatprep.subr.bf16.mxu0 0
        %656 = vmatpush1.bf16.msra.mxu0 0
        %657 = vmatprep.subr.bf16.mxu0 0
        %658 = vmatpush1.bf16.msra.mxu0 0
        %659 = vmatprep.subr.bf16.mxu0 0
        %660 = vmatpush1.bf16.msra.mxu0 0
        %661 = vmatprep.subr.bf16.mxu0 0
        %662 = vmatpush1.bf16.msra.mxu0 %v645
        %663 = vmatprep.subr.bf16.mxu0 0
        %664 = vmatpush2.bf16.msra.mxu0 0
        %665 = vmatprep.subr.bf16.mxu0 0
        %666 = vmatpush2.bf16.msra.mxu0 0
        %667 = vmatprep.subr.bf16.mxu0 0
        %668 = vmatpush2.bf16.msra.mxu0 0
        %669 = vmatprep.subr.bf16.mxu0 0
        %670 = vmatpush2.bf16.msra.mxu0 0
        %671 = vmatprep.subr.bf16.mxu0 0
        %672 = vmatpush2.bf16.msra.mxu0 0
        %673 = vmatprep.subr.bf16.mxu0 0
        %674 = vmatpush2.bf16.msra.mxu0 0
        %675 = vmatprep.subr.bf16.mxu0 0
        %676 = vmatpush2.bf16.msra.mxu0 0
        %677 = vmatprep.subr.bf16.mxu0 0
        %678 = vmatpush2.bf16.msra.mxu0 0
        %679 = vmatprep.mubr.bf16.mxu0 0
        %680 = vmatmul.mubr.bf16.gmra.mxu0 %v642
        %v681 = vpop.f32.mrf.mxu0
        %v682 = vadd.f32 0.0, %v681
        %v683 = vpop.f32.mrf.mxu0
        %v684 = vpop.f32.mrf.mxu0
        %v685 = vpop.f32.mrf.mxu0
        %686 = vdwg.mxu0
        %v687 = vsel %vm583, %v682, 0.0
        %v688 = vadd.f32 %v687, 0.0
        %vm689 = vcmp.ge.s32.totalorder %v577, 20
        %vm690 = vcmp.lt.s32.totalorder %v577, 40
        %vm691 = vmand %vm689, %vm690
        %v692 = vsel %vm691, 1, 0
        %vm693 = vcmp.eq.s32.totalorder %v692, 1
        %vm694 = vmpackc.low %vm693, %vm693
        %v695 = vsel %vm694, %v571, 0
        %696 = vmatprep.subr.bf16.mxu0 0
        %697 = vmatpush1.bf16.xpose.msra.mxu0 0
        %698 = vmatprep.subr.bf16.mxu0 0
        %699 = vmatpush1.bf16.xpose.msra.mxu0 0
        %700 = vmatprep.subr.bf16.mxu0 0
        %701 = vmatpush1.bf16.xpose.msra.mxu0 0
        %702 = vmatprep.subr.bf16.mxu0 0
        %703 = vmatpush1.bf16.xpose.msra.mxu0 0
        %704 = vmatprep.subr.bf16.mxu0 0
        %705 = vmatpush1.bf16.xpose.msra.mxu0 0
        %706 = vmatprep.subr.bf16.mxu0 0
        %707 = vmatpush1.bf16.xpose.msra.mxu0 0
        %708 = vmatprep.subr.bf16.mxu0 0
        %709 = vmatpush1.bf16.xpose.msra.mxu0 0
        %710 = vmatprep.subr.bf16.mxu0 0
        %711 = vmatpush1.bf16.xpose.msra.mxu0 %v572
        %712 = vmatprep.subr.bf16.mxu0 0
        %713 = vmatpush2.bf16.xpose.msra.mxu0 0
        %714 = vmatprep.subr.bf16.mxu0 0
        %715 = vmatpush2.bf16.xpose.msra.mxu0 0
        %716 = vmatprep.subr.bf16.mxu0 0
        %717 = vmatpush2.bf16.xpose.msra.mxu0 0
        %718 = vmatprep.subr.bf16.mxu0 0
        %719 = vmatpush2.bf16.xpose.msra.mxu0 0
        %720 = vmatprep.subr.bf16.mxu0 0
        %721 = vmatpush2.bf16.xpose.msra.mxu0 0
        %722 = vmatprep.subr.bf16.mxu0 0
        %723 = vmatpush2.bf16.xpose.msra.mxu0 0
        %724 = vmatprep.subr.bf16.mxu0 0
        %725 = vmatpush2.bf16.xpose.msra.mxu0 0
        %726 = vmatprep.subr.bf16.mxu0 0
        %727 = vmatpush2.bf16.xpose.msra.mxu0 0
        %728 = vmatprep.mubr.bf16.mxu0 0
        %729 = vmatmul.mubr.bf16.gmra.mxu0 %v695
        %v730 = vpop.f32.mrf.mxu0
        %v731 = vadd.f32 0.0, %v730
        %v732 = vpop.f32.mrf.mxu0
        %v733 = vpop.f32.mrf.mxu0
        %v734 = vpop.f32.mrf.mxu0
        %735 = vdwg.mxu0
        %v736 = vmul.f32 %v731, 0.2236068
        %v737 = vsel %vm578, %v736, -inf
        %v738 = vsel %vm628, %v737, -inf
        %739 = vmax.xlane.f32.xlu0 %v738
        %v740 = vpop.xlane.xlu0 %739
        %v741 = vsub.f32 %v737, %v740
        %v742 = vmul.f32 %v741, 1.442695
        %v743 = vpow.pop %v742
        %v744 = vsel %vm628, %v743, 0.0
        %745 = vadd.xlane.f32.xlu0 %v744
        %v746 = vpop.xlane.xlu0 %745
        %v747 = vrcp.pop %v746
        %v748 = vmul.f32 %v743, %v747
        %v749 = vpack.c.bf16 %v748, %v748
        %v751 = vsel %vm628, %v749, 0
        %753 = vmatprep.subr.bf16.mxu0 0
        %754 = vmatpush1.bf16.msra.mxu0 0
        %755 = vmatprep.subr.bf16.mxu0 0
        %756 = vmatpush1.bf16.msra.mxu0 0
        %757 = vmatprep.subr.bf16.mxu0 0
        %758 = vmatpush1.bf16.msra.mxu0 0
        %759 = vmatprep.subr.bf16.mxu0 0
        %760 = vmatpush1.bf16.msra.mxu0 0
        %761 = vmatprep.subr.bf16.mxu0 0
        %762 = vmatpush1.bf16.msra.mxu0 0
        %763 = vmatprep.subr.bf16.mxu0 0
        %764 = vmatpush1.bf16.msra.mxu0 0
        %765 = vmatprep.subr.bf16.mxu0 0
        %766 = vmatpush1.bf16.msra.mxu0 0
        %767 = vmatprep.subr.bf16.mxu0 0
        %768 = vmatpush1.bf16.msra.mxu0 %v645
        %769 = vmatprep.subr.bf16.mxu0 0
        %770 = vmatpush2.bf16.msra.mxu0 0
        %771 = vmatprep.subr.bf16.mxu0 0
        %772 = vmatpush2.bf16.msra.mxu0 0
        %773 = vmatprep.subr.bf16.mxu0 0
        %774 = vmatpush2.bf16.msra.mxu0 0
        %775 = vmatprep.subr.bf16.mxu0 0
        %776 = vmatpush2.bf16.msra.mxu0 0
        %777 = vmatprep.subr.bf16.mxu0 0
        %778 = vmatpush2.bf16.msra.mxu0 0
        %779 = vmatprep.subr.bf16.mxu0 0
        %780 = vmatpush2.bf16.msra.mxu0 0
        %781 = vmatprep.subr.bf16.mxu0 0
        %782 = vmatpush2.bf16.msra.mxu0 0
        %783 = vmatprep.subr.bf16.mxu0 0
        %784 = vmatpush2.bf16.msra.mxu0 0
        %785 = vmatprep.mubr.bf16.mxu0 0
        %786 = vmatmul.mubr.bf16.gmra.mxu0 %v751
        %v787 = vpop.f32.mrf.mxu0
        %v788 = vadd.f32 0.0, %v787
        %v789 = vpop.f32.mrf.mxu0
        %v790 = vpop.f32.mrf.mxu0
        %v791 = vpop.f32.mrf.mxu0
        %792 = vdwg.mxu0
        %v793 = vsel %vm693, %v788, 0.0
        %v794 = vadd.f32 %v688, %v793
        %vm795 = vcmp.ge.s32.totalorder %v577, 40
        %vm796 = vcmp.lt.s32.totalorder %v577, 60
        %vm797 = vmand %vm795, %vm796
        %v798 = vsel %vm797, 1, 0
        %vm799 = vcmp.eq.s32.totalorder %v798, 1
        %vm800 = vmpackc.low %vm799, %vm799
        %v801 = vsel %vm800, %v571, 0
        %802 = vmatprep.subr.bf16.mxu0 0
        %803 = vmatpush1.bf16.xpose.msra.mxu0 0
        %804 = vmatprep.subr.bf16.mxu0 0
        %805 = vmatpush1.bf16.xpose.msra.mxu0 0
        %806 = vmatprep.subr.bf16.mxu0 0
        %807 = vmatpush1.bf16.xpose.msra.mxu0 0
        %808 = vmatprep.subr.bf16.mxu0 0
        %809 = vmatpush1.bf16.xpose.msra.mxu0 0
        %810 = vmatprep.subr.bf16.mxu0 0
        %811 = vmatpush1.bf16.xpose.msra.mxu0 0
        %812 = vmatprep.subr.bf16.mxu0 0
        %813 = vmatpush1.bf16.xpose.msra.mxu0 0
        %814 = vmatprep.subr.bf16.mxu0 0
        %815 = vmatpush1.bf16.xpose.msra.mxu0 0
        %816 = vmatprep.subr.bf16.mxu0 0
        %817 = vmatpush1.bf16.xpose.msra.mxu0 %v572
        %818 = vmatprep.subr.bf16.mxu0 0
        %819 = vmatpush2.bf16.xpose.msra.mxu0 0
        %820 = vmatprep.subr.bf16.mxu0 0
        %821 = vmatpush2.bf16.xpose.msra.mxu0 0
        %822 = vmatprep.subr.bf16.mxu0 0
        %823 = vmatpush2.bf16.xpose.msra.mxu0 0
        %824 = vmatprep.subr.bf16.mxu0 0
        %825 = vmatpush2.bf16.xpose.msra.mxu0 0
        %826 = vmatprep.subr.bf16.mxu0 0
        %827 = vmatpush2.bf16.xpose.msra.mxu0 0
        %828 = vmatprep.subr.bf16.mxu0 0
        %829 = vmatpush2.bf16.xpose.msra.mxu0 0
        %830 = vmatprep.subr.bf16.mxu0 0
        %831 = vmatpush2.bf16.xpose.msra.mxu0 0
        %832 = vmatprep.subr.bf16.mxu0 0
        %833 = vmatpush2.bf16.xpose.msra.mxu0 0
        %834 = vmatprep.mubr.bf16.mxu0 0
        %835 = vmatmul.mubr.bf16.gmra.mxu0 %v801
        %v836 = vpop.f32.mrf.mxu0
        %v837 = vadd.f32 0.0, %v836
        %v838 = vpop.f32.mrf.mxu0
        %v839 = vpop.f32.mrf.mxu0
        %v840 = vpop.f32.mrf.mxu0
        %841 = vdwg.mxu0
        %v842 = vmul.f32 %v837, 0.2236068
        %v843 = vsel %vm578, %v842, -inf
        %v844 = vsel %vm628, %v843, -inf
        %845 = vmax.xlane.f32.xlu0 %v844
        %v846 = vpop.xlane.xlu0 %845
        %v847 = vsub.f32 %v843, %v846
        %v848 = vmul.f32 %v847, 1.442695
        %v849 = vpow.pop %v848
        %v850 = vsel %vm628, %v849, 0.0
        %851 = vadd.xlane.f32.xlu0 %v850
        %v852 = vpop.xlane.xlu0 %851
        %v853 = vrcp.pop %v852
        %v854 = vmul.f32 %v849, %v853
        %v855 = vpack.c.bf16 %v854, %v854
        %v857 = vsel %vm628, %v855, 0
        %859 = vmatprep.subr.bf16.mxu0 0
        %860 = vmatpush1.bf16.msra.mxu0 0
        %861 = vmatprep.subr.bf16.mxu0 0
        %862 = vmatpush1.bf16.msra.mxu0 0
        %863 = vmatprep.subr.bf16.mxu0 0
        %864 = vmatpush1.bf16.msra.mxu0 0
        %865 = vmatprep.subr.bf16.mxu0 0
        %866 = vmatpush1.bf16.msra.mxu0 0
        %867 = vmatprep.subr.bf16.mxu0 0
        %868 = vmatpush1.bf16.msra.mxu0 0
        %869 = vmatprep.subr.bf16.mxu0 0
        %870 = vmatpush1.bf16.msra.mxu0 0
        %871 = vmatprep.subr.bf16.mxu0 0
        %872 = vmatpush1.bf16.msra.mxu0 0
        %873 = vmatprep.subr.bf16.mxu0 0
        %874 = vmatpush1.bf16.msra.mxu0 %v645
        %875 = vmatprep.subr.bf16.mxu0 0
        %876 = vmatpush2.bf16.msra.mxu0 0
        %877 = vmatprep.subr.bf16.mxu0 0
        %878 = vmatpush2.bf16.msra.mxu0 0
        %879 = vmatprep.subr.bf16.mxu0 0
        %880 = vmatpush2.bf16.msra.mxu0 0
        %881 = vmatprep.subr.bf16.mxu0 0
        %882 = vmatpush2.bf16.msra.mxu0 0
        %883 = vmatprep.subr.bf16.mxu0 0
        %884 = vmatpush2.bf16.msra.mxu0 0
        %885 = vmatprep.subr.bf16.mxu0 0
        %886 = vmatpush2.bf16.msra.mxu0 0
        %887 = vmatprep.subr.bf16.mxu0 0
        %888 = vmatpush2.bf16.msra.mxu0 0
        %889 = vmatprep.subr.bf16.mxu0 0
        %890 = vmatpush2.bf16.msra.mxu0 0
        %891 = vmatprep.mubr.bf16.mxu0 0
        %892 = vmatmul.mubr.bf16.gmra.mxu0 %v857
        %v893 = vpop.f32.mrf.mxu0
        %v894 = vadd.f32 0.0, %v893
        %v895 = vpop.f32.mrf.mxu0
        %v896 = vpop.f32.mrf.mxu0
        %v897 = vpop.f32.mrf.mxu0
        %898 = vdwg.mxu0
        %v899 = vsel %vm799, %v894, 0.0
        %v900 = vadd.f32 %v794, %v899
        %vm901 = vcmp.ge.s32.totalorder %v577, 60
        %vm902 = vcmp.lt.s32.totalorder %v577, 80
        %vm903 = vmand %vm901, %vm902
        %v904 = vsel %vm903, 1, 0
        %vm905 = vcmp.eq.s32.totalorder %v904, 1
        %vm906 = vmpackc.low %vm905, %vm905
        %v907 = vsel %vm906, %v571, 0
        %908 = vmatprep.subr.bf16.mxu0 0
        %909 = vmatpush1.bf16.xpose.msra.mxu0 0
        %910 = vmatprep.subr.bf16.mxu0 0
        %911 = vmatpush1.bf16.xpose.msra.mxu0 0
        %912 = vmatprep.subr.bf16.mxu0 0
        %913 = vmatpush1.bf16.xpose.msra.mxu0 0
        %914 = vmatprep.subr.bf16.mxu0 0
        %915 = vmatpush1.bf16.xpose.msra.mxu0 0
        %916 = vmatprep.subr.bf16.mxu0 0
        %917 = vmatpush1.bf16.xpose.msra.mxu0 0
        %918 = vmatprep.subr.bf16.mxu0 0
        %919 = vmatpush1.bf16.xpose.msra.mxu0 0
        %920 = vmatprep.subr.bf16.mxu0 0
        %921 = vmatpush1.bf16.xpose.msra.mxu0 0
        %922 = vmatprep.subr.bf16.mxu0 0
        %923 = vmatpush1.bf16.xpose.msra.mxu0 %v572
        %924 = vmatprep.subr.bf16.mxu0 0
        %925 = vmatpush2.bf16.xpose.msra.mxu0 0
        %926 = vmatprep.subr.bf16.mxu0 0
        %927 = vmatpush2.bf16.xpose.msra.mxu0 0
        %928 = vmatprep.subr.bf16.mxu0 0
        %929 = vmatpush2.bf16.xpose.msra.mxu0 0
        %930 = vmatprep.subr.bf16.mxu0 0
        %931 = vmatpush2.bf16.xpose.msra.mxu0 0
        %932 = vmatprep.subr.bf16.mxu0 0
        %933 = vmatpush2.bf16.xpose.msra.mxu0 0
        %934 = vmatprep.subr.bf16.mxu0 0
        %935 = vmatpush2.bf16.xpose.msra.mxu0 0
        %936 = vmatprep.subr.bf16.mxu0 0
        %937 = vmatpush2.bf16.xpose.msra.mxu0 0
        %938 = vmatprep.subr.bf16.mxu0 0
        %939 = vmatpush2.bf16.xpose.msra.mxu0 0
        %940 = vmatprep.mubr.bf16.mxu0 0
        %941 = vmatmul.mubr.bf16.gmra.mxu0 %v907
        %v942 = vpop.f32.mrf.mxu0
        %v943 = vadd.f32 0.0, %v942
        %v944 = vpop.f32.mrf.mxu0
        %v945 = vpop.f32.mrf.mxu0
        %v946 = vpop.f32.mrf.mxu0
        %947 = vdwg.mxu0
        %v948 = vmul.f32 %v943, 0.2236068
        %v949 = vsel %vm578, %v948, -inf
        %v950 = vsel %vm628, %v949, -inf
        %951 = vmax.xlane.f32.xlu0 %v950
        %v952 = vpop.xlane.xlu0 %951
        %v953 = vsub.f32 %v949, %v952
        %v954 = vmul.f32 %v953, 1.442695
        %v955 = vpow.pop %v954
        %v956 = vsel %vm628, %v955, 0.0
        %957 = vadd.xlane.f32.xlu0 %v956
        %v958 = vpop.xlane.xlu0 %957
        %v959 = vrcp.pop %v958
        %v960 = vmul.f32 %v955, %v959
        %v961 = vpack.c.bf16 %v960, %v960
        %v963 = vsel %vm628, %v961, 0
        %965 = vmatprep.subr.bf16.mxu0 0
        %966 = vmatpush1.bf16.msra.mxu0 0
        %967 = vmatprep.subr.bf16.mxu0 0
        %968 = vmatpush1.bf16.msra.mxu0 0
        %969 = vmatprep.subr.bf16.mxu0 0
        %970 = vmatpush1.bf16.msra.mxu0 0
        %971 = vmatprep.subr.bf16.mxu0 0
        %972 = vmatpush1.bf16.msra.mxu0 0
        %973 = vmatprep.subr.bf16.mxu0 0
        %974 = vmatpush1.bf16.msra.mxu0 0
        %975 = vmatprep.subr.bf16.mxu0 0
        %976 = vmatpush1.bf16.msra.mxu0 0
        %977 = vmatprep.subr.bf16.mxu0 0
        %978 = vmatpush1.bf16.msra.mxu0 0
        %979 = vmatprep.subr.bf16.mxu0 0
        %980 = vmatpush1.bf16.msra.mxu0 %v645
        %981 = vmatprep.subr.bf16.mxu0 0
        %982 = vmatpush2.bf16.msra.mxu0 0
        %983 = vmatprep.subr.bf16.mxu0 0
        %984 = vmatpush2.bf16.msra.mxu0 0
        %985 = vmatprep.subr.bf16.mxu0 0
        %986 = vmatpush2.bf16.msra.mxu0 0
        %987 = vmatprep.subr.bf16.mxu0 0
        %988 = vmatpush2.bf16.msra.mxu0 0
        %989 = vmatprep.subr.bf16.mxu0 0
        %990 = vmatpush2.bf16.msra.mxu0 0
        %991 = vmatprep.subr.bf16.mxu0 0
        %992 = vmatpush2.bf16.msra.mxu0 0
        %993 = vmatprep.subr.bf16.mxu0 0
        %994 = vmatpush2.bf16.msra.mxu0 0
        %995 = vmatprep.subr.bf16.mxu0 0
        %996 = vmatpush2.bf16.msra.mxu0 0
        %997 = vmatprep.mubr.bf16.mxu0 0
        %998 = vmatmul.mubr.bf16.gmra.mxu0 %v963
        %v999 = vpop.f32.mrf.mxu0
        %v1000 = vadd.f32 0.0, %v999
        %v1001 = vpop.f32.mrf.mxu0
        %v1002 = vpop.f32.mrf.mxu0
        %v1003 = vpop.f32.mrf.mxu0
        %1004 = vdwg.mxu0
        %v1005 = vsel %vm905, %v1000, 0.0
        %v1006 = vadd.f32 %v900, %v1005
        %vm1007 = vcmp.ge.s32.totalorder %v577, 80
        %vm1008 = vcmp.lt.s32.totalorder %v577, 100
        %vm1009 = vmand %vm1007, %vm1008
        %v1010 = vsel %vm1009, 1, 0
        %vm1011 = vcmp.eq.s32.totalorder %v1010, 1
        %vm1012 = vmpackc.low %vm1011, %vm1011
        %v1013 = vsel %vm1012, %v571, 0
        %1014 = vmatprep.subr.bf16.mxu0 0
        %1015 = vmatpush1.bf16.xpose.msra.mxu0 0
        %1016 = vmatprep.subr.bf16.mxu0 0
        %1017 = vmatpush1.bf16.xpose.msra.mxu0 0
        %1018 = vmatprep.subr.bf16.mxu0 0
        %1019 = vmatpush1.bf16.xpose.msra.mxu0 0
        %1020 = vmatprep.subr.bf16.mxu0 0
        %1021 = vmatpush1.bf16.xpose.msra.mxu0 0
        %1022 = vmatprep.subr.bf16.mxu0 0
        %1023 = vmatpush1.bf16.xpose.msra.mxu0 0
        %1024 = vmatprep.subr.bf16.mxu0 0
        %1025 = vmatpush1.bf16.xpose.msra.mxu0 0
        %1026 = vmatprep.subr.bf16.mxu0 0
        %1027 = vmatpush1.bf16.xpose.msra.mxu0 0
        %1028 = vmatprep.subr.bf16.mxu0 0
        %1029 = vmatpush1.bf16.xpose.msra.mxu0 %v572
        %1030 = vmatprep.subr.bf16.mxu0 0
        %1031 = vmatpush2.bf16.xpose.msra.mxu0 0
        %1032 = vmatprep.subr.bf16.mxu0 0
        %1033 = vmatpush2.bf16.xpose.msra.mxu0 0
        %1034 = vmatprep.subr.bf16.mxu0 0
        %1035 = vmatpush2.bf16.xpose.msra.mxu0 0
        %1036 = vmatprep.subr.bf16.mxu0 0
        %1037 = vmatpush2.bf16.xpose.msra.mxu0 0
        %1038 = vmatprep.subr.bf16.mxu0 0
        %1039 = vmatpush2.bf16.xpose.msra.mxu0 0
        %1040 = vmatprep.subr.bf16.mxu0 0
        %1041 = vmatpush2.bf16.xpose.msra.mxu0 0
        %1042 = vmatprep.subr.bf16.mxu0 0
        %1043 = vmatpush2.bf16.xpose.msra.mxu0 0
        %1044 = vmatprep.subr.bf16.mxu0 0
        %1045 = vmatpush2.bf16.xpose.msra.mxu0 0
        %1046 = vmatprep.mubr.bf16.mxu0 0
        %1047 = vmatmul.mubr.bf16.gmra.mxu0 %v1013
        %v1048 = vpop.f32.mrf.mxu0
        %v1049 = vadd.f32 0.0, %v1048
        %v1050 = vpop.f32.mrf.mxu0
        %v1051 = vpop.f32.mrf.mxu0
        %v1052 = vpop.f32.mrf.mxu0
        %1053 = vdwg.mxu0
        %v1054 = vmul.f32 %v1049, 0.2236068
        %v1055 = vsel %vm578, %v1054, -inf
        %v1056 = vsel %vm628, %v1055, -inf
        %1057 = vmax.xlane.f32.xlu0 %v1056
        %v1058 = vpop.xlane.xlu0 %1057
        %v1059 = vsub.f32 %v1055, %v1058
        %v1060 = vmul.f32 %v1059, 1.442695
        %v1061 = vpow.pop %v1060
        %v1062 = vsel %vm628, %v1061, 0.0
        %1063 = vadd.xlane.f32.xlu0 %v1062
        %v1064 = vpop.xlane.xlu0 %1063
        %v1065 = vrcp.pop %v1064
        %v1066 = vmul.f32 %v1061, %v1065
        %v1067 = vpack.c.bf16 %v1066, %v1066
        %v1069 = vsel %vm628, %v1067, 0
        %1071 = vmatprep.subr.bf16.mxu0 0
        %1072 = vmatpush1.bf16.msra.mxu0 0
        %1073 = vmatprep.subr.bf16.mxu0 0
        %1074 = vmatpush1.bf16.msra.mxu0 0
        %1075 = vmatprep.subr.bf16.mxu0 0
        %1076 = vmatpush1.bf16.msra.mxu0 0
        %1077 = vmatprep.subr.bf16.mxu0 0
        %1078 = vmatpush1.bf16.msra.mxu0 0
        %1079 = vmatprep.subr.bf16.mxu0 0
        %1080 = vmatpush1.bf16.msra.mxu0 0
        %1081 = vmatprep.subr.bf16.mxu0 0
        %1082 = vmatpush1.bf16.msra.mxu0 0
        %1083 = vmatprep.subr.bf16.mxu0 0
        %1084 = vmatpush1.bf16.msra.mxu0 0
        %1085 = vmatprep.subr.bf16.mxu0 0
        %1086 = vmatpush1.bf16.msra.mxu0 %v645
        %1087 = vmatprep.subr.bf16.mxu0 0
        %1088 = vmatpush2.bf16.msra.mxu0 0
        %1089 = vmatprep.subr.bf16.mxu0 0
        %1090 = vmatpush2.bf16.msra.mxu0 0
        %1091 = vmatprep.subr.bf16.mxu0 0
        %1092 = vmatpush2.bf16.msra.mxu0 0
        %1093 = vmatprep.subr.bf16.mxu0 0
        %1094 = vmatpush2.bf16.msra.mxu0 0
        %1095 = vmatprep.subr.bf16.mxu0 0
        %1096 = vmatpush2.bf16.msra.mxu0 0
        %1097 = vmatprep.subr.bf16.mxu0 0
        %1098 = vmatpush2.bf16.msra.mxu0 0
        %1099 = vmatprep.subr.bf16.mxu0 0
        %1100 = vmatpush2.bf16.msra.mxu0 0
        %1101 = vmatprep.subr.bf16.mxu0 0
        %1102 = vmatpush2.bf16.msra.mxu0 0
        %1103 = vmatprep.mubr.bf16.mxu0 0
        %1104 = vmatmul.mubr.bf16.gmra.mxu0 %v1069
        %v1105 = vpop.f32.mrf.mxu0
        %v1106 = vadd.f32 0.0, %v1105
        %v1107 = vpop.f32.mrf.mxu0
        %v1108 = vpop.f32.mrf.mxu0
        %v1109 = vpop.f32.mrf.mxu0
        %1110 = vdwg.mxu0
        %v1111 = vsel %vm1011, %v1106, 0.0
        %v1112 = vadd.f32 %v1006, %v1111
        %vm1113 = vcmp.ge.s32.totalorder %v577, 100
        %vm1114 = vcmp.lt.s32.totalorder %v577, 120
        %vm1115 = vmand %vm1113, %vm1114
        %v1116 = vsel %vm1115, 1, 0
        %vm1117 = vcmp.eq.s32.totalorder %v1116, 1
        %vm1118 = vmpackc.low %vm1117, %vm1117
        %v1119 = vsel %vm1118, %v571, 0
        %1120 = vmatprep.subr.bf16.mxu0 0
        %1121 = vmatpush1.bf16.xpose.msra.mxu0 0
        %1122 = vmatprep.subr.bf16.mxu0 0
        %1123 = vmatpush1.bf16.xpose.msra.mxu0 0
        %1124 = vmatprep.subr.bf16.mxu0 0
        %1125 = vmatpush1.bf16.xpose.msra.mxu0 0
        %1126 = vmatprep.subr.bf16.mxu0 0
        %1127 = vmatpush1.bf16.xpose.msra.mxu0 0
        %1128 = vmatprep.subr.bf16.mxu0 0
        %1129 = vmatpush1.bf16.xpose.msra.mxu0 0
        %1130 = vmatprep.subr.bf16.mxu0 0
        %1131 = vmatpush1.bf16.xpose.msra.mxu0 0
        %1132 = vmatprep.subr.bf16.mxu0 0
        %1133 = vmatpush1.bf16.xpose.msra.mxu0 0
        %1134 = vmatprep.subr.bf16.mxu0 0
        %1135 = vmatpush1.bf16.xpose.msra.mxu0 %v572
        %1136 = vmatprep.subr.bf16.mxu0 0
        %1137 = vmatpush2.bf16.xpose.msra.mxu0 0
        %1138 = vmatprep.subr.bf16.mxu0 0
        %1139 = vmatpush2.bf16.xpose.msra.mxu0 0
        %1140 = vmatprep.subr.bf16.mxu0 0
        %1141 = vmatpush2.bf16.xpose.msra.mxu0 0
        %1142 = vmatprep.subr.bf16.mxu0 0
        %1143 = vmatpush2.bf16.xpose.msra.mxu0 0
        %1144 = vmatprep.subr.bf16.mxu0 0
        %1145 = vmatpush2.bf16.xpose.msra.mxu0 0
        %1146 = vmatprep.subr.bf16.mxu0 0
        %1147 = vmatpush2.bf16.xpose.msra.mxu0 0
        %1148 = vmatprep.subr.bf16.mxu0 0
        %1149 = vmatpush2.bf16.xpose.msra.mxu0 0
        %1150 = vmatprep.subr.bf16.mxu0 0
        %1151 = vmatpush2.bf16.xpose.msra.mxu0 0
        %1152 = vmatprep.mubr.bf16.mxu0 0
        %1153 = vmatmul.mubr.bf16.gmra.mxu0 %v1119
        %v1154 = vpop.f32.mrf.mxu0
        %v1155 = vadd.f32 0.0, %v1154
        %v1156 = vpop.f32.mrf.mxu0
        %v1157 = vpop.f32.mrf.mxu0
        %v1158 = vpop.f32.mrf.mxu0
        %1159 = vdwg.mxu0
        %v1160 = vmul.f32 %v1155, 0.2236068
        %v1161 = vsel %vm578, %v1160, -inf
        %v1162 = vsel %vm628, %v1161, -inf
        %1163 = vmax.xlane.f32.xlu0 %v1162
        %v1164 = vpop.xlane.xlu0 %1163
        %v1165 = vsub.f32 %v1161, %v1164
        %v1166 = vmul.f32 %v1165, 1.442695
        %v1167 = vpow.pop %v1166
        %v1168 = vsel %vm628, %v1167, 0.0
        %1169 = vadd.xlane.f32.xlu0 %v1168
        %v1170 = vpop.xlane.xlu0 %1169
        %v1171 = vrcp.pop %v1170
        %v1172 = vmul.f32 %v1167, %v1171
        %v1173 = vpack.c.bf16 %v1172, %v1172
        %v1175 = vsel %vm628, %v1173, 0
        %1177 = vmatprep.subr.bf16.mxu0 0
        %1178 = vmatpush1.bf16.msra.mxu0 0
        %1179 = vmatprep.subr.bf16.mxu0 0
        %1180 = vmatpush1.bf16.msra.mxu0 0
        %1181 = vmatprep.subr.bf16.mxu0 0
        %1182 = vmatpush1.bf16.msra.mxu0 0
        %1183 = vmatprep.subr.bf16.mxu0 0
        %1184 = vmatpush1.bf16.msra.mxu0 0
        %1185 = vmatprep.subr.bf16.mxu0 0
        %1186 = vmatpush1.bf16.msra.mxu0 0
        %1187 = vmatprep.subr.bf16.mxu0 0
        %1188 = vmatpush1.bf16.msra.mxu0 0
        %1189 = vmatprep.subr.bf16.mxu0 0
        %1190 = vmatpush1.bf16.msra.mxu0 0
        %1191 = vmatprep.subr.bf16.mxu0 0
        %1192 = vmatpush1.bf16.msra.mxu0 %v645
        %1193 = vmatprep.subr.bf16.mxu0 0
        %1194 = vmatpush2.bf16.msra.mxu0 0
        %1195 = vmatprep.subr.bf16.mxu0 0
        %1196 = vmatpush2.bf16.msra.mxu0 0
        %1197 = vmatprep.subr.bf16.mxu0 0
        %1198 = vmatpush2.bf16.msra.mxu0 0
        %1199 = vmatprep.subr.bf16.mxu0 0
        %1200 = vmatpush2.bf16.msra.mxu0 0
        %1201 = vmatprep.subr.bf16.mxu0 0
        %1202 = vmatpush2.bf16.msra.mxu0 0
        %1203 = vmatprep.subr.bf16.mxu0 0
        %1204 = vmatpush2.bf16.msra.mxu0 0
        %1205 = vmatprep.subr.bf16.mxu0 0
        %1206 = vmatpush2.bf16.msra.mxu0 0
        %1207 = vmatprep.subr.bf16.mxu0 0
        %1208 = vmatpush2.bf16.msra.mxu0 0
        %1209 = vmatprep.mubr.bf16.mxu0 0
        %1210 = vmatmul.mubr.bf16.gmra.mxu0 %v1175
        %v1211 = vpop.f32.mrf.mxu0
        %v1212 = vadd.f32 0.0, %v1211
        %v1213 = vpop.f32.mrf.mxu0
        %v1214 = vpop.f32.mrf.mxu0
        %v1215 = vpop.f32.mrf.mxu0
        %1216 = vdwg.mxu0
        %v1217 = vsel %vm1117, %v1212, 0.0
        %v1218 = vadd.f32 %v1112, %v1217
        %v1219 = vpack.c.bf16 %v1218, %v1218
        %v1220 = vld [vmem:[%s4] sm:$0xf]
        %v1221 = vld [vmem:[%s4 + $0x4] sm:$0xf]
        %v1222 = vld [vmem:[%s4 + $0x8] sm:$0xf]
        %v1223 = vld [vmem:[%s4 + $0xc] sm:$0xf]
        %v1224 = vld [vmem:[%s4 + $0x10] sm:$0xf]
        %v1225 = vld [vmem:[%s4 + $0x14] sm:$0xf]
        %v1226 = vld [vmem:[%s4 + $0x18] sm:$0xf]
        %v1227 = vld [vmem:[%s4 + $0x1c] sm:$0xf]
        %v1228 = vld [vmem:[%s4 + $0x20] sm:$0xf]
        %v1229 = vld [vmem:[%s4 + $0x24] sm:$0xf]
        %v1230 = vld [vmem:[%s4 + $0x28] sm:$0xf]
        %v1231 = vld [vmem:[%s4 + $0x2c] sm:$0xf]
        %v1232 = vld [vmem:[%s4 + $0x30] sm:$0xf]
        %v1233 = vld [vmem:[%s4 + $0x34] sm:$0xf]
        %v1234 = vld [vmem:[%s4 + $0x38] sm:$0xf]
        %v1235 = vld [vmem:[%s4 + $0x3c] sm:$0xf]
        %v1236 = vld [vmem:[%s5] sm:$0x1]
        %v1238 = vlaneseq
        %v1239 = vshrl.u32 %v1238, 7
        %v1240 = vsub.s32 0, %v1239
        %v1241 = vrot.slane %v1236, %v1240
        %v1259 = vunpack.c.l.b16 %v1220
        %v1260 = vunpack.c.l.b16 %v1221
        %v1261 = vunpack.c.l.b16 %v1222
        %v1262 = vunpack.c.l.b16 %v1223
        %v1263 = vunpack.c.l.b16 %v1224
        %v1264 = vunpack.c.l.b16 %v1225
        %v1265 = vunpack.c.l.b16 %v1226
        %v1266 = vunpack.c.l.b16 %v1227
        %v1267 = vunpack.c.l.b16 %v1228
        %v1268 = vunpack.c.l.b16 %v1229
        %v1269 = vunpack.c.l.b16 %v1230
        %v1270 = vunpack.c.l.b16 %v1231
        %v1271 = vunpack.c.l.b16 %v1232
        %v1272 = vunpack.c.l.b16 %v1233
        %v1273 = vunpack.c.l.b16 %v1234
        %v1274 = vunpack.c.l.b16 %v1235
        %v1275 = vpack.c.b16 %v1260, %v1259
        %v1276 = vpack.c.b16 %v1262, %v1261
        %v1277 = vpack.c.b16 %v1264, %v1263
        %v1278 = vpack.c.b16 %v1266, %v1265
        %v1279 = vpack.c.b16 %v1268, %v1267
        %v1280 = vpack.c.b16 %v1270, %v1269
        %v1281 = vpack.c.b16 %v1272, %v1271
        %v1282 = vpack.c.b16 %v1274, %v1273
        %1291 = vmatprep.subr.bf16.mxu0 0
        %1292 = vmatpush1.bf16.msra.mxu0 %v1282
        %1293 = vmatprep.subr.bf16.mxu0 0
        %1294 = vmatpush1.bf16.msra.mxu0 %v1281
        %1295 = vmatprep.subr.bf16.mxu0 0
        %1296 = vmatpush1.bf16.msra.mxu0 %v1280
        %1297 = vmatprep.subr.bf16.mxu0 0
        %1298 = vmatpush1.bf16.msra.mxu0 %v1279
        %1299 = vmatprep.subr.bf16.mxu0 0
        %1300 = vmatpush1.bf16.msra.mxu0 %v1278
        %1301 = vmatprep.subr.bf16.mxu0 0
        %1302 = vmatpush1.bf16.msra.mxu0 %v1277
        %1303 = vmatprep.subr.bf16.mxu0 0
        %1304 = vmatpush1.bf16.msra.mxu0 %v1276
        %1305 = vmatprep.subr.bf16.mxu0 0
        %1306 = vmatpush1.bf16.msra.mxu0 %v1275
        %1307 = vmatprep.subr.bf16.mxu0 0
        %1308 = vmatpush2.bf16.msra.mxu0 0
        %1309 = vmatprep.subr.bf16.mxu0 0
        %1310 = vmatpush2.bf16.msra.mxu0 0
        %1311 = vmatprep.subr.bf16.mxu0 0
        %1312 = vmatpush2.bf16.msra.mxu0 0
        %1313 = vmatprep.subr.bf16.mxu0 0
        %1314 = vmatpush2.bf16.msra.mxu0 0
        %1315 = vmatprep.subr.bf16.mxu0 0
        %1316 = vmatpush2.bf16.msra.mxu0 0
        %1317 = vmatprep.subr.bf16.mxu0 0
        %1318 = vmatpush2.bf16.msra.mxu0 0
        %1319 = vmatprep.subr.bf16.mxu0 0
        %1320 = vmatpush2.bf16.msra.mxu0 0
        %1321 = vmatprep.subr.bf16.mxu0 0
        %1322 = vmatpush2.bf16.msra.mxu0 0
        %1323 = vmatprep.mubr.bf16.mxu0 0
        %1324 = vmatmul.mubr.bf16.gmra.mxu0 %v1219
        %v1325 = vpop.f32.mrf.mxu0
        %v1326 = vadd.f32 %v1241, %v1325
        %v1327 = vpop.f32.mrf.mxu0
        %v1328 = vpop.f32.mrf.mxu0
        %v1329 = vpop.f32.mrf.mxu0
        %1330 = vdwg.mxu0
        %v1331 = vadd.f32 %v302, %v1326
        %v1332 = vld [vmem:[%s2] sm:$0x1]
        %v1333 = vsel %vm304, %v1331, 0.0
        %1334 = vadd.xlane.f32.xlu0 %v1333
        %v1335 = vpop.xlane.xlu0 %1334
        %v1336 = vmul.f32 %v1335, %v308
        %v1337 = vsub.f32 %v1331, %v1336
        %v1338 = vmul.f32 %v1337, %v1337
        %v1339 = vsel %vm304, %v1338, 0.0
        %1340 = vadd.xlane.f32.xlu0 %v1339
        %v1341 = vpop.xlane.xlu0 %1340
        %v1342 = vmul.f32 %v1341, %v308
        %v1343 = vadd.f32 %v1342, 1e-05
        %v1344 = vrsqrt.pop %v1343
        %v1345 = vmul.f32 %v1337, %v1344
        %v1347 = vlaneseq
        %v1348 = vshrl.u32 %v1347, 7
        %v1349 = vsub.s32 0, %v1348
        %v1350 = vrot.slane %v1332, %v1349
        %v1352 = vmul.f32 %v1345, %v1350
        %v1353 = vpack.c.bf16 %v1352, %v1352
        %v1354 = vld [vmem:[%s6] sm:$0xff]
        %v1355 = vld [vmem:[%s6 + $0x8] sm:$0xff]
        %v1356 = vld [vmem:[%s6 + $0x10] sm:$0xff]
        %v1357 = vld [vmem:[%s6 + $0x18] sm:$0xff]
        %v1358 = vld [vmem:[%s6 + $0x20] sm:$0xff]
        %v1359 = vld [vmem:[%s6 + $0x28] sm:$0xff]
        %v1360 = vld [vmem:[%s6 + $0x30] sm:$0xff]
        %v1361 = vld [vmem:[%s6 + $0x38] sm:$0xff]
        %v1362 = vld [vmem:[%s6 + $0x40] sm:$0xff]
        %v1363 = vld [vmem:[%s6 + $0x48] sm:$0xff]
        %v1364 = vld [vmem:[%s6 + $0x50] sm:$0xff]
        %v1365 = vld [vmem:[%s6 + $0x58] sm:$0xff]
        %v1366 = vld [vmem:[%s6 + $0x60] sm:$0xff]
        %v1367 = vld [vmem:[%s6 + $0x68] sm:$0xff]
        %v1368 = vld [vmem:[%s6 + $0x70] sm:$0xff]
        %v1369 = vld [vmem:[%s6 + $0x78] sm:$0xff]
        %v1370 = vld [vmem:[%s6 + $0x80] sm:$0xff]
        %v1371 = vld [vmem:[%s6 + $0x88] sm:$0xff]
        %v1372 = vld [vmem:[%s6 + $0x90] sm:$0xff]
        %v1373 = vld [vmem:[%s6 + $0x98] sm:$0xff]
        %v1374 = vld [vmem:[%s6 + $0xa0] sm:$0xff]
        %v1375 = vld [vmem:[%s6 + $0xa8] sm:$0xff]
        %v1376 = vld [vmem:[%s6 + $0xb0] sm:$0xff]
        %v1377 = vld [vmem:[%s6 + $0xb8] sm:$0xff]
        %v1378 = vld [vmem:[%s6 + $0xc0] sm:$0xff]
        %v1379 = vld [vmem:[%s6 + $0xc8] sm:$0xff]
        %v1380 = vld [vmem:[%s6 + $0xd0] sm:$0xff]
        %v1381 = vld [vmem:[%s6 + $0xd8] sm:$0xff]
        %v1382 = vld [vmem:[%s6 + $0xe0] sm:$0xff]
        %v1383 = vld [vmem:[%s6 + $0xe8] sm:$0xff]
        %v1414 = vunpack.c.l.b16 %v1354
        %v1415 = vunpack.c.h.b16 %v1354
        %v1416 = vunpack.c.l.b16 %v1355
        %v1417 = vunpack.c.h.b16 %v1355
        %v1418 = vunpack.c.l.b16 %v1356
        %v1419 = vunpack.c.h.b16 %v1356
        %v1420 = vunpack.c.l.b16 %v1357
        %v1421 = vunpack.c.h.b16 %v1357
        %v1422 = vunpack.c.l.b16 %v1358
        %v1423 = vunpack.c.h.b16 %v1358
        %v1424 = vunpack.c.l.b16 %v1359
        %v1425 = vunpack.c.h.b16 %v1359
        %v1426 = vunpack.c.l.b16 %v1360
        %v1427 = vunpack.c.h.b16 %v1360
        %v1428 = vunpack.c.l.b16 %v1361
        %v1429 = vunpack.c.h.b16 %v1361
        %v1430 = vunpack.c.l.b16 %v1362
        %v1431 = vunpack.c.h.b16 %v1362
        %v1432 = vunpack.c.l.b16 %v1363
        %v1433 = vunpack.c.h.b16 %v1363
        %v1434 = vunpack.c.l.b16 %v1364
        %v1435 = vunpack.c.h.b16 %v1364
        %v1436 = vunpack.c.l.b16 %v1365
        %v1437 = vunpack.c.h.b16 %v1365
        %v1438 = vunpack.c.l.b16 %v1366
        %v1439 = vunpack.c.h.b16 %v1366
        %v1440 = vunpack.c.l.b16 %v1367
        %v1441 = vunpack.c.h.b16 %v1367
        %v1442 = vunpack.c.l.b16 %v1368
        %v1443 = vunpack.c.h.b16 %v1368
        %v1444 = vunpack.c.l.b16 %v1369
        %v1445 = vunpack.c.h.b16 %v1369
        %v1446 = vunpack.c.l.b16 %v1370
        %v1447 = vunpack.c.h.b16 %v1370
        %v1448 = vunpack.c.l.b16 %v1371
        %v1449 = vunpack.c.h.b16 %v1371
        %v1450 = vunpack.c.l.b16 %v1372
        %v1451 = vunpack.c.h.b16 %v1372
        %v1452 = vunpack.c.l.b16 %v1373
        %v1453 = vunpack.c.h.b16 %v1373
        %v1454 = vunpack.c.l.b16 %v1374
        %v1455 = vunpack.c.h.b16 %v1374
        %v1456 = vunpack.c.l.b16 %v1375
        %v1457 = vunpack.c.h.b16 %v1375
        %v1458 = vunpack.c.l.b16 %v1376
        %v1459 = vunpack.c.h.b16 %v1376
        %v1460 = vunpack.c.l.b16 %v1377
        %v1461 = vunpack.c.h.b16 %v1377
        %v1462 = vunpack.c.l.b16 %v1378
        %v1463 = vunpack.c.h.b16 %v1378
        %v1464 = vunpack.c.l.b16 %v1379
        %v1465 = vunpack.c.h.b16 %v1379
        %v1466 = vunpack.c.l.b16 %v1380
        %v1467 = vunpack.c.h.b16 %v1380
        %v1468 = vunpack.c.l.b16 %v1381
        %v1469 = vunpack.c.h.b16 %v1381
        %v1470 = vunpack.c.l.b16 %v1382
        %v1471 = vunpack.c.h.b16 %v1382
        %v1472 = vunpack.c.l.b16 %v1383
        %v1473 = vunpack.c.h.b16 %v1383
        %v1474 = vpack.c.b16 %v1418, %v1414
        %v1475 = vpack.c.b16 %v1419, %v1415
        %v1476 = vpack.c.b16 %v1420, %v1416
        %v1477 = vpack.c.b16 %v1421, %v1417
        %v1478 = vpack.c.b16 %v1426, %v1422
        %v1479 = vpack.c.b16 %v1427, %v1423
        %v1480 = vpack.c.b16 %v1428, %v1424
        %v1481 = vpack.c.b16 %v1429, %v1425
        %v1482 = vpack.c.b16 %v1434, %v1430
        %v1483 = vpack.c.b16 %v1435, %v1431
        %v1484 = vpack.c.b16 %v1436, %v1432
        %v1485 = vpack.c.b16 %v1437, %v1433
        %v1486 = vpack.c.b16 %v1442, %v1438
        %v1487 = vpack.c.b16 %v1443, %v1439
        %v1488 = vpack.c.b16 %v1444, %v1440
        %v1489 = vpack.c.b16 %v1445, %v1441
        %v1490 = vpack.c.b16 %v1450, %v1446
        %v1491 = vpack.c.b16 %v1451, %v1447
        %v1492 = vpack.c.b16 %v1452, %v1448
        %v1493 = vpack.c.b16 %v1453, %v1449
        %v1494 = vpack.c.b16 %v1458, %v1454
        %v1495 = vpack.c.b16 %v1459, %v1455
        %v1496 = vpack.c.b16 %v1460, %v1456
        %v1497 = vpack.c.b16 %v1461, %v1457
        %v1498 = vpack.c.b16 %v1466, %v1462
        %v1499 = vpack.c.b16 %v1467, %v1463
        %v1500 = vpack.c.b16 %v1468, %v1464
        %v1501 = vpack.c.b16 %v1469, %v1465
        %v1502 = vpack.c.b16 %v1470, %v1470
        %v1503 = vpack.c.b16 %v1471, %v1471
        %v1504 = vpack.c.b16 %v1472, %v1472
        %v1505 = vpack.c.b16 %v1473, %v1473
        %v1535 = vsel %vm304, %v1353, 0
        %v1538 = vsel %vm480, %v1502, 0
        %v1541 = vsel %vm480, %v1503, 0
        %v1544 = vsel %vm480, %v1504, 0
        %v1547 = vsel %vm480, %v1505, 0
        %1549 = vmatprep.subr.bf16.mxu0 %v1541
        %1550 = vmatpush1.bf16.msra.mxu0 %v1538
        %1551 = vmatprep.subr.bf16.mxu0 %v1499
        %1552 = vmatpush1.bf16.msra.mxu0 %v1498
        %1553 = vmatprep.subr.bf16.mxu0 %v1495
        %1554 = vmatpush1.bf16.msra.mxu0 %v1494
        %1555 = vmatprep.subr.bf16.mxu0 %v1491
        %1556 = vmatpush1.bf16.msra.mxu0 %v1490
        %1557 = vmatprep.subr.bf16.mxu0 %v1487
        %1558 = vmatpush1.bf16.msra.mxu0 %v1486
        %1559 = vmatprep.subr.bf16.mxu0 %v1483
        %1560 = vmatpush1.bf16.msra.mxu0 %v1482
        %1561 = vmatprep.subr.bf16.mxu0 %v1479
        %1562 = vmatpush1.bf16.msra.mxu0 %v1478
        %1563 = vmatprep.subr.bf16.mxu0 %v1475
        %1564 = vmatpush1.bf16.msra.mxu0 %v1474
        %1565 = vmatprep.subr.bf16.mxu0 0
        %1566 = vmatpush2.bf16.msra.mxu0 0
        %1567 = vmatprep.subr.bf16.mxu0 0
        %1568 = vmatpush2.bf16.msra.mxu0 0
        %1569 = vmatprep.subr.bf16.mxu0 0
        %1570 = vmatpush2.bf16.msra.mxu0 0
        %1571 = vmatprep.subr.bf16.mxu0 0
        %1572 = vmatpush2.bf16.msra.mxu0 0
        %1573 = vmatprep.subr.bf16.mxu0 0
        %1574 = vmatpush2.bf16.msra.mxu0 0
        %1575 = vmatprep.subr.bf16.mxu0 0
        %1576 = vmatpush2.bf16.msra.mxu0 0
        %1577 = vmatprep.subr.bf16.mxu0 0
        %1578 = vmatpush2.bf16.msra.mxu0 0
        %1579 = vmatprep.subr.bf16.mxu0 0
        %1580 = vmatpush2.bf16.msra.mxu0 0
        %1581 = vmatprep.mubr.bf16.mxu0 0
        %1582 = vmatmul.mubr.bf16.gmra.mxu0 %v1535
        %v1583 = vpop.f32.mrf.mxu0
        %v1584 = vadd.f32 0.0, %v1583
        %v1585 = vpop.f32.mrf.mxu0
        %v1586 = vadd.f32 0.0, %v1585
        %v1587 = vpop.f32.mrf.mxu0
        %v1588 = vpop.f32.mrf.mxu0
        %1589 = vdwg.mxu0
        %1590 = vmatprep.subr.bf16.mxu0 %v1547
        %1591 = vmatpush1.bf16.msra.mxu0 %v1544
        %1592 = vmatprep.subr.bf16.mxu0 %v1501
        %1593 = vmatpush1.bf16.msra.mxu0 %v1500
        %1594 = vmatprep.subr.bf16.mxu0 %v1497
        %1595 = vmatpush1.bf16.msra.mxu0 %v1496
        %1596 = vmatprep.subr.bf16.mxu0 %v1493
        %1597 = vmatpush1.bf16.msra.mxu0 %v1492
        %1598 = vmatprep.subr.bf16.mxu0 %v1489
        %1599 = vmatpush1.bf16.msra.mxu0 %v1488
        %1600 = vmatprep.subr.bf16.mxu0 %v1485
        %1601 = vmatpush1.bf16.msra.mxu0 %v1484
        %1602 = vmatprep.subr.bf16.mxu0 %v1481
        %1603 = vmatpush1.bf16.msra.mxu0 %v1480
        %1604 = vmatprep.subr.bf16.mxu0 %v1477
        %1605 = vmatpush1.bf16.msra.mxu0 %v1476
        %1606 = vmatprep.subr.bf16.mxu0 0
        %1607 = vmatpush2.bf16.msra.mxu0 0
        %1608 = vmatprep.subr.bf16.mxu0 0
        %1609 = vmatpush2.bf16.msra.mxu0 0
        %1610 = vmatprep.subr.bf16.mxu0 0
        %1611 = vmatpush2.bf16.msra.mxu0 0
        %1612 = vmatprep.subr.bf16.mxu0 0
        %1613 = vmatpush2.bf16.msra.mxu0 0
        %1614 = vmatprep.subr.bf16.mxu0 0
        %1615 = vmatpush2.bf16.msra.mxu0 0
        %1616 = vmatprep.subr.bf16.mxu0 0
        %1617 = vmatpush2.bf16.msra.mxu0 0
        %1618 = vmatprep.subr.bf16.mxu0 0
        %1619 = vmatpush2.bf16.msra.mxu0 0
        %1620 = vmatprep.subr.bf16.mxu0 0
        %1621 = vmatpush2.bf16.msra.mxu0 0
        %1622 = vmatprep.mubr.bf16.mxu0 0
        %1623 = vmatmul.mubr.bf16.gmra.mxu0 %v1535
        %v1624 = vpop.f32.mrf.mxu0
        %v1625 = vadd.f32 0.0, %v1624
        %v1626 = vpop.f32.mrf.mxu0
        %v1627 = vadd.f32 0.0, %v1626
        %v1628 = vpop.f32.mrf.mxu0
        %v1629 = vpop.f32.mrf.mxu0
        %1630 = vdwg.mxu0
        %v1631 = vmul.f32 %v1584, 0.5
        %v1632 = vmul.f32 %v1586, 0.5
        %v1633 = vmul.f32 %v1625, 0.5
        %v1634 = vmul.f32 %v1627, 0.5
        %v1635 = vmul.f32 %v1584, 0.70710677
        %v1636 = vmul.f32 %v1586, 0.70710677
        %v1637 = vmul.f32 %v1625, 0.70710677
        %v1638 = vmul.f32 %v1627, 0.70710677
        %v1639 = verf.f32.pop %v1635
        %v1640 = verf.f32.pop %v1636
        %v1641 = verf.f32.pop %v1637
        %v1642 = verf.f32.pop %v1638
        %v1643 = vadd.f32 %v1639, 1.0
        %v1644 = vadd.f32 %v1640, 1.0
        %v1645 = vadd.f32 %v1641, 1.0
        %v1646 = vadd.f32 %v1642, 1.0
        %v1647 = vmul.f32 %v1631, %v1643
        %v1648 = vmul.f32 %v1632, %v1644
        %v1649 = vmul.f32 %v1633, %v1645
        %v1650 = vmul.f32 %v1634, %v1646
        %v1651 = vpack.c.bf16 %v1647, %v1647
        %v1652 = vpack.c.bf16 %v1648, %v1648
        %v1653 = vpack.c.bf16 %v1649, %v1649
        %v1654 = vpack.c.bf16 %v1650, %v1650
        %v1655 = vld [vmem:[%s7] sm:$0xf]
        %v1656 = vld [vmem:[%s7 + $0x4] sm:$0xf]
        %v1657 = vld [vmem:[%s7 + $0x8] sm:$0xf]
        %v1658 = vld [vmem:[%s7 + $0xc] sm:$0xf]
        %v1659 = vld [vmem:[%s7 + $0x10] sm:$0xf]
        %v1660 = vld [vmem:[%s7 + $0x14] sm:$0xf]
        %v1661 = vld [vmem:[%s7 + $0x18] sm:$0xf]
        %v1662 = vld [vmem:[%s7 + $0x1c] sm:$0xf]
        %v1663 = vld [vmem:[%s7 + $0x20] sm:$0xf]
        %v1664 = vld [vmem:[%s7 + $0x24] sm:$0xf]
        %v1665 = vld [vmem:[%s7 + $0x28] sm:$0xf]
        %v1666 = vld [vmem:[%s7 + $0x2c] sm:$0xf]
        %v1667 = vld [vmem:[%s7 + $0x30] sm:$0xf]
        %v1668 = vld [vmem:[%s7 + $0x34] sm:$0xf]
        %v1669 = vld [vmem:[%s7 + $0x38] sm:$0xf]
        %v1670 = vld [vmem:[%s7 + $0x3c] sm:$0xf]
        %v1671 = vld [vmem:[%s7 + $0x40] sm:$0xf]
        %v1672 = vld [vmem:[%s7 + $0x44] sm:$0xf]
        %v1673 = vld [vmem:[%s7 + $0x48] sm:$0xf]
        %v1674 = vld [vmem:[%s7 + $0x4c] sm:$0xf]
        %v1675 = vld [vmem:[%s7 + $0x50] sm:$0xf]
        %v1676 = vld [vmem:[%s7 + $0x54] sm:$0xf]
        %v1677 = vld [vmem:[%s7 + $0x58] sm:$0xf]
        %v1678 = vld [vmem:[%s7 + $0x5c] sm:$0xf]
        %v1679 = vld [vmem:[%s7 + $0x60] sm:$0xf]
        %v1680 = vld [vmem:[%s7 + $0x64] sm:$0xf]
        %v1681 = vld [vmem:[%s7 + $0x68] sm:$0xf]
        %v1682 = vld [vmem:[%s7 + $0x6c] sm:$0xf]
        %v1683 = vld [vmem:[%s7 + $0x70] sm:$0xf]
        %v1684 = vld [vmem:[%s7 + $0x74] sm:$0xf]
        %v1685 = vld [vmem:[%s7 + $0x78] sm:$0xf]
        %v1686 = vld [vmem:[%s7 + $0x7c] sm:$0xf]
        %v1687 = vld [vmem:[%s7 + $0x80] sm:$0xf]
        %v1688 = vld [vmem:[%s7 + $0x84] sm:$0xf]
        %v1689 = vld [vmem:[%s7 + $0x88] sm:$0xf]
        %v1690 = vld [vmem:[%s7 + $0x8c] sm:$0xf]
        %v1691 = vld [vmem:[%s7 + $0x90] sm:$0xf]
        %v1692 = vld [vmem:[%s7 + $0x94] sm:$0xf]
        %v1693 = vld [vmem:[%s7 + $0x98] sm:$0xf]
        %v1694 = vld [vmem:[%s7 + $0x9c] sm:$0xf]
        %v1695 = vld [vmem:[%s7 + $0xa0] sm:$0xf]
        %v1696 = vld [vmem:[%s7 + $0xa4] sm:$0xf]
        %v1697 = vld [vmem:[%s7 + $0xa8] sm:$0xf]
        %v1698 = vld [vmem:[%s7 + $0xac] sm:$0xf]
        %v1699 = vld [vmem:[%s7 + $0xb0] sm:$0xf]
        %v1700 = vld [vmem:[%s7 + $0xb4] sm:$0xf]
        %v1701 = vld [vmem:[%s7 + $0xb8] sm:$0xf]
        %v1702 = vld [vmem:[%s7 + $0xbc] sm:$0xf]
        %v1703 = vld [vmem:[%s7 + $0xc0] sm:$0xf]
        %v1704 = vld [vmem:[%s7 + $0xc4] sm:$0xf]
        %v1705 = vld [vmem:[%s7 + $0xc8] sm:$0xf]
        %v1706 = vld [vmem:[%s7 + $0xcc] sm:$0xf]
        %v1707 = vld [vmem:[%s7 + $0xd0] sm:$0xf]
        %v1708 = vld [vmem:[%s7 + $0xd4] sm:$0xf]
        %v1709 = vld [vmem:[%s7 + $0xd8] sm:$0xf]
        %v1710 = vld [vmem:[%s7 + $0xdc] sm:$0xf]
        %v1711 = vld [vmem:[%s7 + $0xe0] sm:$0xf]
        %v1712 = vld [vmem:[%s7 + $0xe4] sm:$0xf]
        %v1713 = vld [vmem:[%s7 + $0xe8] sm:$0xf]
        %v1714 = vld [vmem:[%s7 + $0xec] sm:$0xf]
        %v1715 = vld [vmem:[%s7 + $0xf0] sm:$0xf]
        %v1716 = vld [vmem:[%s7 + $0xf4] sm:$0xf]
        %v1717 = vld [vmem:[%s7 + $0xf8] sm:$0xf]
        %v1718 = vld [vmem:[%s7 + $0xfc] sm:$0xf]
        %v1783 = vunpack.c.l.b16 %v1655
        %v1784 = vunpack.c.l.b16 %v1656
        %v1785 = vunpack.c.l.b16 %v1657
        %v1786 = vunpack.c.l.b16 %v1658
        %v1787 = vunpack.c.l.b16 %v1659
        %v1788 = vunpack.c.l.b16 %v1660
        %v1789 = vunpack.c.l.b16 %v1661
        %v1790 = vunpack.c.l.b16 %v1662
        %v1791 = vunpack.c.l.b16 %v1663
        %v1792 = vunpack.c.l.b16 %v1664
        %v1793 = vunpack.c.l.b16 %v1665
        %v1794 = vunpack.c.l.b16 %v1666
        %v1795 = vunpack.c.l.b16 %v1667
        %v1796 = vunpack.c.l.b16 %v1668
        %v1797 = vunpack.c.l.b16 %v1669
        %v1798 = vunpack.c.l.b16 %v1670
        %v1799 = vunpack.c.l.b16 %v1671
        %v1800 = vunpack.c.l.b16 %v1672
        %v1801 = vunpack.c.l.b16 %v1673
        %v1802 = vunpack.c.l.b16 %v1674
        %v1803 = vunpack.c.l.b16 %v1675
        %v1804 = vunpack.c.l.b16 %v1676
        %v1805 = vunpack.c.l.b16 %v1677
        %v1806 = vunpack.c.l.b16 %v1678
        %v1807 = vunpack.c.l.b16 %v1679
        %v1808 = vunpack.c.l.b16 %v1680
        %v1809 = vunpack.c.l.b16 %v1681
        %v1810 = vunpack.c.l.b16 %v1682
        %v1811 = vunpack.c.l.b16 %v1683
        %v1812 = vunpack.c.l.b16 %v1684
        %v1813 = vunpack.c.l.b16 %v1685
        %v1814 = vunpack.c.l.b16 %v1686
        %v1815 = vunpack.c.l.b16 %v1687
        %v1816 = vunpack.c.l.b16 %v1688
        %v1817 = vunpack.c.l.b16 %v1689
        %v1818 = vunpack.c.l.b16 %v1690
        %v1819 = vunpack.c.l.b16 %v1691
        %v1820 = vunpack.c.l.b16 %v1692
        %v1821 = vunpack.c.l.b16 %v1693
        %v1822 = vunpack.c.l.b16 %v1694
        %v1823 = vunpack.c.l.b16 %v1695
        %v1824 = vunpack.c.l.b16 %v1696
        %v1825 = vunpack.c.l.b16 %v1697
        %v1826 = vunpack.c.l.b16 %v1698
        %v1827 = vunpack.c.l.b16 %v1699
        %v1828 = vunpack.c.l.b16 %v1700
        %v1829 = vunpack.c.l.b16 %v1701
        %v1830 = vunpack.c.l.b16 %v1702
        %v1831 = vunpack.c.l.b16 %v1703
        %v1832 = vunpack.c.l.b16 %v1704
        %v1833 = vunpack.c.l.b16 %v1705
        %v1834 = vunpack.c.l.b16 %v1706
        %v1835 = vunpack.c.l.b16 %v1707
        %v1836 = vunpack.c.l.b16 %v1708
        %v1837 = vunpack.c.l.b16 %v1709
        %v1838 = vunpack.c.l.b16 %v1710
        %v1839 = vunpack.c.l.b16 %v1711
        %v1840 = vunpack.c.l.b16 %v1712
        %v1841 = vunpack.c.l.b16 %v1713
        %v1842 = vunpack.c.l.b16 %v1714
        %v1843 = vunpack.c.l.b16 %v1715
        %v1844 = vunpack.c.l.b16 %v1716
        %v1845 = vunpack.c.l.b16 %v1717
        %v1846 = vunpack.c.l.b16 %v1718
        %v1847 = vpack.c.b16 %v1784, %v1783
        %v1848 = vpack.c.b16 %v1786, %v1785
        %v1849 = vpack.c.b16 %v1788, %v1787
        %v1850 = vpack.c.b16 %v1790, %v1789
        %v1851 = vpack.c.b16 %v1792, %v1791
        %v1852 = vpack.c.b16 %v1794, %v1793
        %v1853 = vpack.c.b16 %v1796, %v1795
        %v1854 = vpack.c.b16 %v1798, %v1797
        %v1855 = vpack.c.b16 %v1800, %v1799
        %v1856 = vpack.c.b16 %v1802, %v1801
        %v1857 = vpack.c.b16 %v1804, %v1803
        %v1858 = vpack.c.b16 %v1806, %v1805
        %v1859 = vpack.c.b16 %v1808, %v1807
        %v1860 = vpack.c.b16 %v1810, %v1809
        %v1861 = vpack.c.b16 %v1812, %v1811
        %v1862 = vpack.c.b16 %v1814, %v1813
        %v1863 = vpack.c.b16 %v1816, %v1815
        %v1864 = vpack.c.b16 %v1818, %v1817
        %v1865 = vpack.c.b16 %v1820, %v1819
        %v1866 = vpack.c.b16 %v1822, %v1821
        %v1867 = vpack.c.b16 %v1824, %v1823
        %v1868 = vpack.c.b16 %v1826, %v1825
        %v1869 = vpack.c.b16 %v1828, %v1827
        %v1870 = vpack.c.b16 %v1830, %v1829
        %v1871 = vpack.c.b16 %v1832, %v1831
        %v1872 = vpack.c.b16 %v1834, %v1833
        %v1873 = vpack.c.b16 %v1836, %v1835
        %v1874 = vpack.c.b16 %v1838, %v1837
        %v1875 = vpack.c.b16 %v1840, %v1839
        %v1876 = vpack.c.b16 %v1842, %v1841
        %v1877 = vpack.c.b16 %v1844, %v1843
        %v1878 = vpack.c.b16 %v1846, %v1845
        %1911 = vmatprep.subr.bf16.mxu0 0
        %1912 = vmatpush1.bf16.msra.mxu0 %v1854
        %1913 = vmatprep.subr.bf16.mxu0 0
        %1914 = vmatpush1.bf16.msra.mxu0 %v1853
        %1915 = vmatprep.subr.bf16.mxu0 0
        %1916 = vmatpush1.bf16.msra.mxu0 %v1852
        %1917 = vmatprep.subr.bf16.mxu0 0
        %1918 = vmatpush1.bf16.msra.mxu0 %v1851
        %1919 = vmatprep.subr.bf16.mxu0 0
        %1920 = vmatpush1.bf16.msra.mxu0 %v1850
        %1921 = vmatprep.subr.bf16.mxu0 0
        %1922 = vmatpush1.bf16.msra.mxu0 %v1849
        %1923 = vmatprep.subr.bf16.mxu0 0
        %1924 = vmatpush1.bf16.msra.mxu0 %v1848
        %1925 = vmatprep.subr.bf16.mxu0 0
        %1926 = vmatpush1.bf16.msra.mxu0 %v1847
        %1927 = vmatprep.subr.bf16.mxu0 0
        %1928 = vmatpush2.bf16.msra.mxu0 %v1862
        %1929 = vmatprep.subr.bf16.mxu0 0
        %1930 = vmatpush2.bf16.msra.mxu0 %v1861
        %1931 = vmatprep.subr.bf16.mxu0 0
        %1932 = vmatpush2.bf16.msra.mxu0 %v1860
        %1933 = vmatprep.subr.bf16.mxu0 0
        %1934 = vmatpush2.bf16.msra.mxu0 %v1859
        %1935 = vmatprep.subr.bf16.mxu0 0
        %1936 = vmatpush2.bf16.msra.mxu0 %v1858
        %1937 = vmatprep.subr.bf16.mxu0 0
        %1938 = vmatpush2.bf16.msra.mxu0 %v1857
        %1939 = vmatprep.subr.bf16.mxu0 0
        %1940 = vmatpush2.bf16.msra.mxu0 %v1856
        %1941 = vmatprep.subr.bf16.mxu0 0
        %1942 = vmatpush2.bf16.msra.mxu0 %v1855
        %1943 = vmatprep.mubr.bf16.mxu0 %v1652
        %1944 = vmatmul.mubr.bf16.gmra.mxu0 %v1651
        %v1945 = vpop.f32.mrf.mxu0
        %v1946 = vadd.f32 0.0, %v1945
        %v1947 = vpop.f32.mrf.mxu0
        %v1948 = vpop.f32.mrf.mxu0
        %v1949 = vpop.f32.mrf.mxu0
        %1950 = vdwg.mxu0
        %1951 = vmatprep.subr.bf16.mxu0 0
        %1952 = vmatpush1.bf16.msra.mxu0 %v1870
        %1953 = vmatprep.subr.bf16.mxu0 0
        %1954 = vmatpush1.bf16.msra.mxu0 %v1869
        %1955 = vmatprep.subr.bf16.mxu0 0
        %1956 = vmatpush1.bf16.msra.mxu0 %v1868
        %1957 = vmatprep.subr.bf16.mxu0 0
        %1958 = vmatpush1.bf16.msra.mxu0 %v1867
        %1959 = vmatprep.subr.bf16.mxu0 0
        %1960 = vmatpush1.bf16.msra.mxu0 %v1866
        %1961 = vmatprep.subr.bf16.mxu0 0
        %1962 = vmatpush1.bf16.msra.mxu0 %v1865
        %1963 = vmatprep.subr.bf16.mxu0 0
        %1964 = vmatpush1.bf16.msra.mxu0 %v1864
        %1965 = vmatprep.subr.bf16.mxu0 0
        %1966 = vmatpush1.bf16.msra.mxu0 %v1863
        %1967 = vmatprep.subr.bf16.mxu0 0
        %1968 = vmatpush2.bf16.msra.mxu0 %v1878
        %1969 = vmatprep.subr.bf16.mxu0 0
        %1970 = vmatpush2.bf16.msra.mxu0 %v1877
        %1971 = vmatprep.subr.bf16.mxu0 0
        %1972 = vmatpush2.bf16.msra.mxu0 %v1876
        %1973 = vmatprep.subr.bf16.mxu0 0
        %1974 = vmatpush2.bf16.msra.mxu0 %v1875
        %1975 = vmatprep.subr.bf16.mxu0 0
        %1976 = vmatpush2.bf16.msra.mxu0 %v1874
        %1977 = vmatprep.subr.bf16.mxu0 0
        %1978 = vmatpush2.bf16.msra.mxu0 %v1873
        %1979 = vmatprep.subr.bf16.mxu0 0
        %1980 = vmatpush2.bf16.msra.mxu0 %v1872
        %1981 = vmatprep.subr.bf16.mxu0 0
        %1982 = vmatpush2.bf16.msra.mxu0 %v1871
        %1983 = vmatprep.mubr.bf16.mxu0 %v1654
        %1984 = vmatmul.mubr.bf16.gmra.mxu0 %v1653
        %v1985 = vpop.f32.mrf.mxu0
        %v1986 = vadd.f32 %v1946, %v1985
        %v1987 = vpop.f32.mrf.mxu0
        %v1988 = vpop.f32.mrf.mxu0
        %v1989 = vpop.f32.mrf.mxu0
        %1990 = vdwg.mxu0
        %v1991 = vadd.f32 %v1331, %v1986
        %1992 = vst.msk [vmem:[%s296] sm:$0xff] %vm304, %v1991
        %s1993 = sand.u32 %s203, 1
        %s1994 = scalar_lea.sflag [#allocation3], %s1993
        %s1995 = sand.u32 %s203, 1
        %s1996 = smul.addr %s1995, 8
        %s1997 = scalar_lea.vmem [#allocation2], %s1996
        // Predicated region
        $region53: #{block_forward.1} parent=51 // pred_check
          %p1998 = pneg %p213
        $region54: #{block_forward.1} parent=51 // pred_check_branch
          %2000 = sbr.rel (%p1998) target = $region56
        $region55: #{block_forward.1} parent=51 // pred_region
          %s2002 = ssub.s32 128, 128
          %2003 = vsyncadd %s1994, %s2002
          %s2004 = smul.addr %s22, 128
          %s2005 = scalar_lea.hbm %s8, %s2004
          %s2007 = sshll.u32 %s1997, 4
          %s2008 = int_to_ptr.vmem [resolvable:$true] %s2007
          %2010 = dma.vmem_to_hbm [thread:$0]  %s2008, 128, %s2005, %s1994
        $region56: #{block_forward.1} parent=51 // pred_fallthru
          _
      $region52: #{block_forward.1} parent=5 // pred_fallthru
        _
      %p2011 = scmp.le.s32.totalorder 2, %s17
      // Predicated region
      $region57: #{block_forward.1} parent=5 // pred_check
        %p2012 = pneg %p2011
      $region58: #{block_forward.1} parent=5 // pred_check_branch
        %2014 = sbr.rel (%p2012) target = $region60
      $region59: #{block_forward.1} parent=5 // pred_region
        %s2015 = ssub.s32 %s17, 2
        // Predicated region
        $region61: #{block_forward.1} parent=59 // pred_check
          %p2016 = pneg %p219
        $region62: #{block_forward.1} parent=59 // pred_check_branch
          %2018 = sbr.rel (%p2016) target = $region64
        $region63: #{block_forward.1} parent=59 // pred_region
          %s2019 = sand.u32 %s204, 1
          %s2020 = scalar_lea.sflag [#allocation3], %s2019
          %s2021 = sand.u32 %s204, 1
          %s2022 = smul.addr %s2021, 8
          %s2023 = scalar_lea.vmem [#allocation2], %s2022
          %2024 = dma.done %s2020, 128
        $region64: #{block_forward.1} parent=59 // pred_fallthru
          _
      $region60: #{block_forward.1} parent=5 // pred_fallthru
        _
    $region6: #{block_forward.1} parent=1 // loop_footer
      %s21 = sadd.s32 1, %s17
    $region7: #{block_forward.1} parent=1 // loop_footer_branch
      %16 = sbr.rel target = $region3
    $region8: #{block_forward.1} parent=1 // loop_exit
      _
    %2025 = vsyncpa [#allocation3], 1
    %s2026 = scalar_lea.sflag [#allocation3], 1
    %2027 = vsyncpa %s2026, 1

</llo_original>
